<compile_context>
chip_gen: v7x
topology: tpu7x:2x2x1
jax: 0.10.0
libtpu: 0.0.40
codegen_flags: <defaults>
</compile_context>

<pallas_src>
import jax
import jax.numpy as jnp
from jax.experimental import pallas as pl
from jax.experimental.pallas import tpu as pltpu


def _round_up(a, m):
    return ((a + m - 1) // m) * m


def clip_head_kernel(pooled_ref, w_patch_ref, w_head_ref, b_head_ref, out_ref):
    # Pooled patch embedding: [TILE_B, patch_dim](bf16) @ [patch_dim, width](bf16)
    emb = jnp.dot(pooled_ref[...], w_patch_ref[...],
                  preferred_element_type=jnp.float32)            # [TILE_B, width] f32

    # LayerNorm (ln_post) stats in f32 via E[x^2] - mu^2 (single VALU pass);
    # gamma/beta are folded into w_head / b_head in the wrapper.
    mu = jnp.mean(emb, axis=-1, keepdims=True)
    var = jnp.maximum(jnp.mean(emb * emb, axis=-1, keepdims=True) - mu * mu, 0.0)
    normed = (emb - mu) * jax.lax.rsqrt(var + 1e-5)

    # Fused visual-projection + classifier head: one MXU pass.
    logits = jnp.dot(normed.astype(jnp.bfloat16), w_head_ref[...],
                     preferred_element_type=jnp.float32)         # [TILE_B, c_pad]
    out_ref[...] = logits + b_head_ref[...]


def _prepare_params(params, c_pad):
    w_patch = params["w_patch"].astype(jnp.bfloat16)            # [patch_dim, width]
    gamma = params["gamma"].reshape(-1).astype(jnp.float32)     # [width]
    beta = params["beta"].reshape(-1).astype(jnp.float32)       # [width]
    w_proj = params["w_proj"].astype(jnp.float32)               # [width, out_dim]
    w_cls = params["w_cls"].astype(jnp.float32)                 # [out_dim, nc]
    b_cls = params["b_cls"].reshape(-1).astype(jnp.float32)     # [nc]

    width = w_proj.shape[0]
    num_classes = w_cls.shape[1]

    # Fold LN affine + fuse projection@classifier (algebraically exact, no
    # nonlinearity between them):
    #   ((x*g + b) @ Wp) @ Wc + bc == x @ ((g[:,None]*Wp) @ Wc) + ((b@Wp)@Wc + bc)
    w_head = (gamma[:, None] * w_proj) @ w_cls                  # [width, nc] f32
    bias = (beta @ w_proj) @ w_cls + b_cls                      # [nc] f32

    # Pad classifier columns to a lane-dense multiple of 128.
    w_head_p = jnp.zeros((width, c_pad), jnp.float32)
    w_head_p = w_head_p.at[:, :num_classes].set(w_head).astype(jnp.bfloat16)
    b_head_p = jnp.zeros((1, c_pad), jnp.float32)
    b_head_p = b_head_p.at[0, :num_classes].set(bias)
    return w_patch, w_head_p, b_head_p


def clip_finetuner_forward(x, params, patch=16):
    B, C, H, W = x.shape
    gh, gw = H // patch, W // patch
    patch_dim = C * patch * patch
    num_classes = params["w_cls"].shape[1]
    c_pad = _round_up(num_classes, 128)

    # Mean-pool the non-overlapping patches BEFORE the patch-embed matmul
    # (pooling is linear, so it commutes with the conv-as-matmul).  Pool in the
    # input dtype (no f32 upcast); the matmul operands are bf16 anyway.
    pooled = x.reshape(B, C, gh, patch, gw, patch).mean(axis=(2, 4))
    pooled = pooled.reshape(B, patch_dim)

    # Batch tiling: 256-row M tiles for huge batches (fills the 2x256^2 MXU on
    # v6e/v7x), 128 for medium batches, and for small batches split into >= 2
    # tiles so v7x's two TensorCores both get work.
    if B >= 512:
        tile_b = 256
    elif B > 128:
        tile_b = 128
    else:
        tile_b = max(8, _round_up(B, 16) // 2)
    b_pad = _round_up(B, tile_b)
    if b_pad // tile_b < 2:           # guarantee >= 2 grid steps (v7x dual-TC)
        b_pad = 2 * tile_b

    if b_pad != B:
        pooled = jnp.pad(pooled, ((0, b_pad - B), (0, 0)))
    pooled = pooled.astype(jnp.bfloat16)

    w_patch, w_head, b_head = _prepare_params(params, c_pad)
    width = w_patch.shape[1]

    # Explicit scoped-VMEM budget from the actual buffer set (conservative:
    # double-buffered activation/output tiles, weights counted twice, f32 temps),
    # clamped to stay inside v7x's 64 MiB physical VMEM.
    vmem_need = (2 * tile_b * patch_dim * 2      # pooled tiles (bf16, 2 buffers)
                 + 2 * tile_b * c_pad * 4        # out tiles (f32, 2 buffers)
                 + 2 * patch_dim * width * 2     # w_patch (bf16)
                 + 2 * width * c_pad * 2         # w_head (bf16)
                 + 2 * 8 * c_pad * 4             # bias (sublane-padded)
                 + 4 * tile_b * width * 4)       # emb/normed f32 temporaries
    vmem_limit = min(max(int(1.5 * vmem_need), 16 * 1024 * 1024), 48 * 1024 * 1024)

    def make_in_specs(single_buffer_weights):
        # Constant-index operands never advance along the grid; single-buffer
        # them so the unused second pipeline buffer doesn't burn VMEM.
        wkw = dict(pipeline_mode=pl.Buffered(1)) if single_buffer_weights else {}
        return [
            pl.BlockSpec((tile_b, patch_dim), lambda i: (i, 0)),          # pooled
            pl.BlockSpec((patch_dim, width), lambda i: (0, 0), **wkw),    # patch-embed W
            pl.BlockSpec((width, c_pad), lambda i: (0, 0), **wkw),        # fused head W
            pl.BlockSpec((1, c_pad), lambda i: (0, 0), **wkw),            # fused bias
        ]

    def run(in_specs):
        return pl.pallas_call(
            clip_head_kernel,
            out_shape=jax.ShapeDtypeStruct((b_pad, c_pad), jnp.float32),
            grid=(b_pad // tile_b,),
            in_specs=in_specs,
            out_specs=pl.BlockSpec((tile_b, c_pad), lambda i: (i, 0)),
            compiler_params=pltpu.CompilerParams(
                dimension_semantics=("parallel",),
                vmem_limit_bytes=vmem_limit),
        )(pooled, w_patch, w_head, b_head)

    try:
        out = jax.block_until_ready(run(make_in_specs(True)))
    except Exception:
        # TODO(synk): this jax build rejected pipeline_mode=pl.Buffered(1);
        # fall back to default double-buffered weight BlockSpecs.
        out = run(make_in_specs(False))

    return out[:B, :num_classes]


def _reference_forward(x, params, patch=16):
    # Pure-JAX f32 reference with the original (un-folded, per-patch) structure.
    B, C, H, W = x.shape
    gh, gw = H // patch, W // patch
    patches = x.astype(jnp.float32).reshape(B, C, gh, patch, gw, patch)
    patches = patches.transpose(0, 2, 4, 1, 3, 5).reshape(B, gh * gw, -1)
    emb = patches @ params["w_patch"]
    pooled = emb.mean(axis=1)
    mu = pooled.mean(axis=-1, keepdims=True)
    var = ((pooled - mu) ** 2).mean(axis=-1, keepdims=True)
    normed = (pooled - mu) * jax.lax.rsqrt(var + 1e-5)
    normed = normed * params["gamma"] + params["beta"]
    feats = (normed @ params["w_proj"]).astype(jnp.float32)
    return feats @ params["w_cls"] + params["b_cls"]


if __name__ == "__main__":
    # Small shapes consistent with the module's forward:
    #   x: [batch, 3, 32, 32] image, patch=16 -> 4 patches
    #   "visual" width=32, visual.output_dim=16, num_classes=5 (categories)
    B, C, H, W = 2, 3, 32, 32
    patch = 16
    width, output_dim, num_classes = 32, 16, 5
    patch_dim = C * patch * patch

    key = jax.random.PRNGKey(0)
    kx, k1, k2, k3, k4 = jax.random.split(key, 5)

    x = jax.random.normal(kx, (B, C, H, W), dtype=jnp.float32)

    params = {
        "w_patch": jax.random.normal(k1, (patch_dim, width), jnp.float32) * 0.02,
        "gamma":   jnp.ones((1, width), jnp.float32),
        "beta":    jnp.zeros((1, width), jnp.float32),
        "w_proj":  jax.random.normal(k2, (width, output_dim), jnp.float32) * 0.05,
        "w_cls":   jax.random.normal(k3, (output_dim, num_classes), jnp.float32) * 0.05,
        "b_cls":   jax.random.normal(k4, (1, num_classes), jnp.float32) * 0.01,
    }

    out = clip_finetuner_forward(x, params, patch=patch)
    out = jax.block_until_ready(out)

    ref = _reference_forward(x, params, patch=patch)
    assert out.shape == (B, num_classes)
    assert bool(jnp.all(jnp.isfinite(out)))
    # bf16 matmul operands (f32 accumulation) vs f32 reference -> loose-ish tol.
    assert jnp.allclose(out, ref, atol=1e-2, rtol=1e-2)

    print("KERNEL_OK")
</pallas_src>

<mosaic_0001>
module attributes {stable_mosaic.version = 11 : i64} {
  func.func @clip_head_kernel(%arg0: i32, %arg1: memref<8x768xbf16, #tpu.memory_space<vmem>>, %arg2: memref<768x32xbf16, #tpu.memory_space<vmem>>, %arg3: memref<32x128xbf16, #tpu.memory_space<vmem>>, %arg4: memref<1x128xf32, #tpu.memory_space<vmem>>, %arg5: memref<8x128xf32, #tpu.memory_space<vmem>>) attributes {dimension_semantics = [#tpu.dimension_semantics<parallel>], iteration_bounds = array<i64: 2>, scalar_prefetch = 0 : i64, scratch_operands = 0 : i64, tpu.core_type = #tpu.core_type<tc>, window_params = [{transform_indices = @transform_0, window_bounds = array<i64: 8, 768>}, {pipeline_mode = #tpu.pipeline_mode<synchronous>, transform_indices = @transform_1, window_bounds = array<i64: 768, 32>}, {pipeline_mode = #tpu.pipeline_mode<synchronous>, transform_indices = @transform_2, window_bounds = array<i64: 32, 128>}, {pipeline_mode = #tpu.pipeline_mode<synchronous>, transform_indices = @transform_3, window_bounds = array<i64: 1, 128>}, {transform_indices = @transform_4, window_bounds = array<i64: 8, 128>}]} {
    %c0 = arith.constant 0 : index
    %c0_0 = arith.constant 0 : index
    %0 = vector.load %arg1[%c0, %c0_0] : memref<8x768xbf16, #tpu.memory_space<vmem>>, vector<8x768xbf16>
    %c0_1 = arith.constant 0 : index
    %c0_2 = arith.constant 0 : index
    %1 = vector.load %arg2[%c0_1, %c0_2] : memref<768x32xbf16, #tpu.memory_space<vmem>>, vector<768x32xbf16>
    %cst = arith.constant dense<0.000000e+00> : vector<8x32xf32>
    %2 = tpu.matmul %0, %1, %cst {dimension_numbers = #tpu.dot_dimension_numbers<[1], [0], [0], [1], [0, 0, 1, 1], [], []>} : vector<8x768xbf16>, vector<768x32xbf16>, vector<8x32xf32> -> vector<8x32xf32>
    %cst_3 = arith.constant dense<0.000000e+00> : vector<8xf32>
    %3 = vector.multi_reduction <add>, %2, %cst_3 [1] : vector<8x32xf32> to vector<8xf32>
    %4 = vector.shape_cast %3 : vector<8xf32> to vector<8x1xf32>
    %cst_4 = arith.constant 3.200000e+01 : f32
    %5 = vector.broadcast %cst_4 : f32 to vector<8x1xf32>
    %6 = arith.divf %4, %5 : vector<8x1xf32>
    %7 = arith.mulf %2, %2 : vector<8x32xf32>
    %cst_5 = arith.constant dense<0.000000e+00> : vector<8xf32>
    %8 = vector.multi_reduction <add>, %7, %cst_5 [1] : vector<8x32xf32> to vector<8xf32>
    %9 = vector.shape_cast %8 : vector<8xf32> to vector<8x1xf32>
    %cst_6 = arith.constant 3.200000e+01 : f32
    %10 = vector.broadcast %cst_6 : f32 to vector<8x1xf32>
    %11 = arith.divf %9, %10 : vector<8x1xf32>
    %12 = arith.mulf %6, %6 : vector<8x1xf32>
    %13 = arith.subf %11, %12 : vector<8x1xf32>
    %cst_7 = arith.constant 0.000000e+00 : f32
    %14 = vector.broadcast %cst_7 : f32 to vector<8x1xf32>
    %15 = arith.maximumf %13, %14 : vector<8x1xf32>
    %16 = vector.broadcast %6 : vector<8x1xf32> to vector<8x32xf32>
    %17 = arith.subf %2, %16 : vector<8x32xf32>
    %cst_8 = arith.constant 9.99999974E-6 : f32
    %18 = vector.broadcast %cst_8 : f32 to vector<8x1xf32>
    %19 = arith.addf %15, %18 : vector<8x1xf32>
    %20 = math.rsqrt %19 : vector<8x1xf32>
    %21 = vector.broadcast %20 : vector<8x1xf32> to vector<8x32xf32>
    %22 = arith.mulf %17, %21 : vector<8x32xf32>
    %23 = arith.truncf %22 : vector<8x32xf32> to vector<8x32xbf16>
    %c0_9 = arith.constant 0 : index
    %c0_10 = arith.constant 0 : index
    %24 = vector.load %arg3[%c0_9, %c0_10] : memref<32x128xbf16, #tpu.memory_space<vmem>>, vector<32x128xbf16>
    %cst_11 = arith.constant dense<0.000000e+00> : vector<8x128xf32>
    %25 = tpu.matmul %23, %24, %cst_11 {dimension_numbers = #tpu.dot_dimension_numbers<[1], [0], [0], [1], [0, 0, 1, 1], [], []>} : vector<8x32xbf16>, vector<32x128xbf16>, vector<8x128xf32> -> vector<8x128xf32>
    %c0_12 = arith.constant 0 : index
    %c0_13 = arith.constant 0 : index
    %26 = vector.load %arg4[%c0_12, %c0_13] : memref<1x128xf32, #tpu.memory_space<vmem>>, vector<1x128xf32>
    %27 = vector.broadcast %26 : vector<1x128xf32> to vector<8x128xf32>
    %28 = arith.addf %25, %27 : vector<8x128xf32>
    %c0_14 = arith.constant 0 : index
    %c0_15 = arith.constant 0 : index
    %29 = vector.load %arg5[%c0_14, %c0_15] : memref<8x128xf32, #tpu.memory_space<vmem>>, vector<8x128xf32>
    tpu.vector_store %arg5[%c0_14, %c0_15], %28 {strides = array<i32>} : memref<8x128xf32, #tpu.memory_space<vmem>>, vector<8x128xf32>,
    return
  }
  func.func @transform_0(%arg0: i32) -> (i32, i32) {
    %c0_i32 = arith.constant 0 : i32
    %c0_i32_0 = arith.constant 0 : i32
    return %arg0, %c0_i32 : i32, i32
  }
  func.func @transform_1(%arg0: i32) -> (i32, i32) {
    %c0_i32 = arith.constant 0 : i32
    %c0_i32_0 = arith.constant 0 : i32
    %c0_i32_1 = arith.constant 0 : i32
    return %c0_i32, %c0_i32_0 : i32, i32
  }
  func.func @transform_2(%arg0: i32) -> (i32, i32) {
    %c0_i32 = arith.constant 0 : i32
    %c0_i32_0 = arith.constant 0 : i32
    %c0_i32_1 = arith.constant 0 : i32
    return %c0_i32, %c0_i32_0 : i32, i32
  }
  func.func @transform_3(%arg0: i32) -> (i32, i32) {
    %c0_i32 = arith.constant 0 : i32
    %c0_i32_0 = arith.constant 0 : i32
    %c0_i32_1 = arith.constant 0 : i32
    return %c0_i32, %c0_i32_0 : i32, i32
  }
  func.func @transform_4(%arg0: i32) -> (i32, i32) {
    %c0_i32 = arith.constant 0 : i32
    %c0_i32_0 = arith.constant 0 : i32
    return %arg0, %c0_i32 : i32, i32
  }
}

module attributes {stable_mosaic.version = 11 : i64} {
  func.func @clip_head_kernel(%arg0: i32, %arg1: memref<8x768xbf16, #tpu.memory_space<vmem>>, %arg2: memref<768x32xbf16, #tpu.memory_space<vmem>>, %arg3: memref<32x128xbf16, #tpu.memory_space<vmem>>, %arg4: memref<1x128xf32, #tpu.memory_space<vmem>>, %arg5: memref<8x128xf32, #tpu.memory_space<vmem>>) attributes {dimension_semantics = [#tpu.dimension_semantics<parallel>], iteration_bounds = array<i64: 2>, scalar_prefetch = 0 : i64, scratch_operands = 0 : i64, tpu.core_type = #tpu.core_type<tc>, window_params = [{transform_indices = @transform_0, window_bounds = array<i64: 8, 768>}, {pipeline_mode = #tpu.pipeline_mode<synchronous>, transform_indices = @transform_1, window_bounds = array<i64: 768, 32>}, {pipeline_mode = #tpu.pipeline_mode<synchronous>, transform_indices = @transform_2, window_bounds = array<i64: 32, 128>}, {pipeline_mode = #tpu.pipeline_mode<synchronous>, transform_indices = @transform_3, window_bounds = array<i64: 1, 128>}, {transform_indices = @transform_4, window_bounds = array<i64: 8, 128>}]} {
    %c0 = arith.constant 0 : index
    %c0_0 = arith.constant 0 : index
    %0 = vector.load %arg1[%c0, %c0_0] : memref<8x768xbf16, #tpu.memory_space<vmem>>, vector<8x768xbf16>
    %c0_1 = arith.constant 0 : index
    %c0_2 = arith.constant 0 : index
    %1 = vector.load %arg2[%c0_1, %c0_2] : memref<768x32xbf16, #tpu.memory_space<vmem>>, vector<768x32xbf16>
    %cst = arith.constant dense<0.000000e+00> : vector<8x32xf32>
    %2 = tpu.matmul %0, %1, %cst {dimension_numbers = #tpu.dot_dimension_numbers<[1], [0], [0], [1], [0, 0, 1, 1], [], []>} : vector<8x768xbf16>, vector<768x32xbf16>, vector<8x32xf32> -> vector<8x32xf32>
    %cst_3 = arith.constant dense<0.000000e+00> : vector<8xf32>
    %3 = vector.multi_reduction <add>, %2, %cst_3 [1] : vector<8x32xf32> to vector<8xf32>
    %4 = vector.shape_cast %3 : vector<8xf32> to vector<8x1xf32>
    %cst_4 = arith.constant 3.200000e+01 : f32
    %5 = vector.broadcast %cst_4 : f32 to vector<8x1xf32>
    %6 = arith.divf %4, %5 : vector<8x1xf32>
    %7 = arith.mulf %2, %2 : vector<8x32xf32>
    %cst_5 = arith.constant dense<0.000000e+00> : vector<8xf32>
    %8 = vector.multi_reduction <add>, %7, %cst_5 [1] : vector<8x32xf32> to vector<8xf32>
    %9 = vector.shape_cast %8 : vector<8xf32> to vector<8x1xf32>
    %cst_6 = arith.constant 3.200000e+01 : f32
    %10 = vector.broadcast %cst_6 : f32 to vector<8x1xf32>
    %11 = arith.divf %9, %10 : vector<8x1xf32>
    %12 = arith.mulf %6, %6 : vector<8x1xf32>
    %13 = arith.subf %11, %12 : vector<8x1xf32>
    %cst_7 = arith.constant 0.000000e+00 : f32
    %14 = vector.broadcast %cst_7 : f32 to vector<8x1xf32>
    %15 = arith.maximumf %13, %14 : vector<8x1xf32>
    %16 = vector.broadcast %6 : vector<8x1xf32> to vector<8x32xf32>
    %17 = arith.subf %2, %16 : vector<8x32xf32>
    %cst_8 = arith.constant 9.99999974E-6 : f32
    %18 = vector.broadcast %cst_8 : f32 to vector<8x1xf32>
    %19 = arith.addf %15, %18 : vector<8x1xf32>
    %20 = math.rsqrt %19 : vector<8x1xf32>
    %21 = vector.broadcast %20 : vector<8x1xf32> to vector<8x32xf32>
    %22 = arith.mulf %17, %21 : vector<8x32xf32>
    %23 = arith.truncf %22 : vector<8x32xf32> to vector<8x32xbf16>
    %c0_9 = arith.constant 0 : index
    %c0_10 = arith.constant 0 : index
    %24 = vector.load %arg3[%c0_9, %c0_10] : memref<32x128xbf16, #tpu.memory_space<vmem>>, vector<32x128xbf16>
    %cst_11 = arith.constant dense<0.000000e+00> : vector<8x128xf32>
    %25 = tpu.matmul %23, %24, %cst_11 {dimension_numbers = #tpu.dot_dimension_numbers<[1], [0], [0], [1], [0, 0, 1, 1], [], []>} : vector<8x32xbf16>, vector<32x128xbf16>, vector<8x128xf32> -> vector<8x128xf32>
    %c0_12 = arith.constant 0 : index
    %c0_13 = arith.constant 0 : index
    %26 = vector.load %arg4[%c0_12, %c0_13] : memref<1x128xf32, #tpu.memory_space<vmem>>, vector<1x128xf32>
    %27 = vector.broadcast %26 : vector<1x128xf32> to vector<8x128xf32>
    %28 = arith.addf %25, %27 : vector<8x128xf32>
    %c0_14 = arith.constant 0 : index
    %c0_15 = arith.constant 0 : index
    %29 = vector.load %arg5[%c0_14, %c0_15] : memref<8x128xf32, #tpu.memory_space<vmem>>, vector<8x128xf32>
    tpu.vector_store %arg5[%c0_14, %c0_15], %28 {strides = array<i32>} : memref<8x128xf32, #tpu.memory_space<vmem>>, vector<8x128xf32>,
    return
  }
  func.func @transform_0(%arg0: i32) -> (i32, i32) {
    %c0_i32 = arith.constant 0 : i32
    %c0_i32_0 = arith.constant 0 : i32
    return %arg0, %c0_i32 : i32, i32
  }
  func.func @transform_1(%arg0: i32) -> (i32, i32) {
    %c0_i32 = arith.constant 0 : i32
    %c0_i32_0 = arith.constant 0 : i32
    %c0_i32_1 = arith.constant 0 : i32
    return %c0_i32, %c0_i32_0 : i32, i32
  }
  func.func @transform_2(%arg0: i32) -> (i32, i32) {
    %c0_i32 = arith.constant 0 : i32
    %c0_i32_0 = arith.constant 0 : i32
    %c0_i32_1 = arith.constant 0 : i32
    return %c0_i32, %c0_i32_0 : i32, i32
  }
  func.func @transform_3(%arg0: i32) -> (i32, i32) {
    %c0_i32 = arith.constant 0 : i32
    %c0_i32_0 = arith.constant 0 : i32
    %c0_i32_1 = arith.constant 0 : i32
    return %c0_i32, %c0_i32_0 : i32, i32
  }
  func.func @transform_4(%arg0: i32) -> (i32, i32) {
    %c0_i32 = arith.constant 0 : i32
    %c0_i32_0 = arith.constant 0 : i32
    return %arg0, %c0_i32 : i32, i32
  }
}

</mosaic_0001>

<llo_original>
// kernel: tpu_custom_call.1
$region0: #{tpu_custom_call.1}
  #allocation0 [shape = 'u32[]', space=smem, size = 0x4, offset = 0x4, fixed_abs, tag = 'smem constant byte address 0x4 - core index']
  #allocation1 [shape = 'u32[144,128]{1,0:T(1,128)}', space=vmem, size = 0x12000, scoped, tag = 'internal scratch']
  %s0 = inlined_call_operand.vmem [shape: bf16[16,768], index: 0, kind: input, shape index: {}]
  %s1 = inlined_call_operand.vmem [shape: bf16[768,32], index: 1, kind: input, shape index: {}]
  %s2 = inlined_call_operand.vmem [shape: bf16[32,128], index: 2, kind: input, shape index: {}]
  %s3 = inlined_call_operand.vmem [shape: f32[1,128], index: 3, kind: input, shape index: {}]
  %s4 = inlined_call_operand.hbm [shape: f32[16,128], index: 4, kind: output, shape index: {}]
  %s5 = sld [smem:[#allocation0]]
  $region49: #{tpu_custom_call.1} parent=0
    _
  %s7 = ssub.s32 1, %s5
  %s8 = scalar_select 0, %s7, %s5
  $region1: #{tpu_custom_call.1} parent=0
    #allocation2 [shape = 'u8[8192]{0}', space=vmem, size = 0x2000, scoped, tag = 'output window, operand 0']
    #allocation3 [shape = 's32[2]{0}', space=sflag, size = 0x8, scoped, tag = 'scoped memory for tpu_custom_call.1']
    %9 = vsyncpa [#allocation3], 0
    %s10 = scalar_lea.sflag [#allocation3], 1
    %11 = vsyncpa %s10, 0
    loop: start=0, step=1, limit=4
    $region2: #{tpu_custom_call.1} parent=1 // loop_pre_header
      _
    $region3: #{tpu_custom_call.1} parent=1 // loop_header
      %s13 = sphi 0, %s17
      %p14 = scmp.ge.s32.totalorder %s13, 4
      %s23 = sphi 0, %s25
      %s26 = sphi 0, %s23
      %s27 = sphi 0, %s26
      %s43 = sphi 0, %s27
      %s47 = sphi 0, %s47
      %s49 = sphi 0, %s47
      %s50 = sphi 0, %s49
      %s64 = sphi 0, %s50
      %s68 = sphi 0, %s68
      %s70 = sphi 0, %s68
      %s71 = sphi 0, %s70
      %s85 = sphi 0, %s71
      %s89 = sphi 0, %s89
      %s91 = sphi 0, %s89
      %s92 = sphi 0, %s91
      %s106 = sphi 0, %s92
      %s112 = sphi 0, %s114
      %s115 = sphi 0, %s112
      %s116 = sphi 0, %s115
      %s132 = sphi 0, %s116
    $region4: #{tpu_custom_call.1} parent=1 // loop_header_branch
      %16 = sbr.rel (%p14) target = $region8
    $region5: #{tpu_custom_call.1} parent=1 // loop_body
      %s18 = ssub.s32 %s13, 1
      %s19 = ssub.s32 %s13, 2
      %s20 = sadd.s32 %s13, 1
      %s21 = ssub.s32 %s13, %s20
      %p22 = scmp.eq.s32.totalorder %s21, 0
      %s24 = sadd.s32 %s23, 1
      %s25 = scalar_select %p22, %s23, %s24
      %p28 = pneg %p22
      %p29 = scmp.eq.s32.totalorder %s13, 1
      %p30 = por %p28, %p29
      %p31 = scmp.ne.s32.totalorder %s23, %s26
      %p32 = scmp.eq.s32.totalorder %s13, 0
      %p33 = por %p31, %p32
      %p34 = scmp.ne.s32.totalorder %s23, %s26
      %p35 = scmp.eq.s32.totalorder %s18, 1
      %p36 = por %p34, %p35
      %p37 = scmp.ne.s32.totalorder %s26, %s27
      %p38 = scmp.eq.s32.totalorder %s18, 0
      %p39 = por %p37, %p38
      %p40 = scmp.ne.s32.totalorder %s26, %s27
      %p41 = scmp.eq.s32.totalorder %s19, 1
      %p42 = por %p40, %p41
      %p44 = scmp.ne.s32.totalorder %s27, %s43
      %p45 = scmp.eq.s32.totalorder %s19, 0
      %p46 = por %p44, %p45
      %s48 = sadd.s32 %s47, 1
      %p51 = scmp.eq.s32.totalorder %s13, 1
      %p52 = scmp.ne.s32.totalorder %s47, %s49
      %p53 = scmp.eq.s32.totalorder %s13, 0
      %p54 = por %p52, %p53
      %p55 = scmp.ne.s32.totalorder %s47, %s49
      %p56 = scmp.eq.s32.totalorder %s18, 1
      %p57 = por %p55, %p56
      %p58 = scmp.ne.s32.totalorder %s49, %s50
      %p59 = scmp.eq.s32.totalorder %s18, 0
      %p60 = por %p58, %p59
      %p61 = scmp.ne.s32.totalorder %s49, %s50
      %p62 = scmp.eq.s32.totalorder %s19, 1
      %p63 = por %p61, %p62
      %p65 = scmp.ne.s32.totalorder %s50, %s64
      %p66 = scmp.eq.s32.totalorder %s19, 0
      %p67 = por %p65, %p66
      %s69 = sadd.s32 %s68, 1
      %p72 = scmp.eq.s32.totalorder %s13, 1
      %p73 = scmp.ne.s32.totalorder %s68, %s70
      %p74 = scmp.eq.s32.totalorder %s13, 0
      %p75 = por %p73, %p74
      %p76 = scmp.ne.s32.totalorder %s68, %s70
      %p77 = scmp.eq.s32.totalorder %s18, 1
      %p78 = por %p76, %p77
      %p79 = scmp.ne.s32.totalorder %s70, %s71
      %p80 = scmp.eq.s32.totalorder %s18, 0
      %p81 = por %p79, %p80
      %p82 = scmp.ne.s32.totalorder %s70, %s71
      %p83 = scmp.eq.s32.totalorder %s19, 1
      %p84 = por %p82, %p83
      %p86 = scmp.ne.s32.totalorder %s71, %s85
      %p87 = scmp.eq.s32.totalorder %s19, 0
      %p88 = por %p86, %p87
      %s90 = sadd.s32 %s89, 1
      %p93 = scmp.eq.s32.totalorder %s13, 1
      %p94 = scmp.ne.s32.totalorder %s89, %s91
      %p95 = scmp.eq.s32.totalorder %s13, 0
      %p96 = por %p94, %p95
      %p97 = scmp.ne.s32.totalorder %s89, %s91
      %p98 = scmp.eq.s32.totalorder %s18, 1
      %p99 = por %p97, %p98
      %p100 = scmp.ne.s32.totalorder %s91, %s92
      %p101 = scmp.eq.s32.totalorder %s18, 0
      %p102 = por %p100, %p101
      %p103 = scmp.ne.s32.totalorder %s91, %s92
      %p104 = scmp.eq.s32.totalorder %s19, 1
      %p105 = por %p103, %p104
      %p107 = scmp.ne.s32.totalorder %s92, %s106
      %p108 = scmp.eq.s32.totalorder %s19, 0
      %p109 = por %p107, %p108
      %s110 = ssub.s32 %s13, %s20
      %p111 = scmp.eq.s32.totalorder %s110, 0
      %s113 = sadd.s32 %s112, 1
      %s114 = scalar_select %p111, %s112, %s113
      %p117 = pneg %p111
      %p118 = scmp.eq.s32.totalorder %s13, 1
      %p119 = por %p117, %p118
      %p120 = scmp.ne.s32.totalorder %s112, %s115
      %p121 = scmp.eq.s32.totalorder %s13, 0
      %p122 = por %p120, %p121
      %p123 = scmp.ne.s32.totalorder %s112, %s115
      %p124 = scmp.eq.s32.totalorder %s18, 1
      %p125 = por %p123, %p124
      %p126 = scmp.ne.s32.totalorder %s115, %s116
      %p127 = scmp.eq.s32.totalorder %s18, 0
      %p128 = por %p126, %p127
      %p129 = scmp.ne.s32.totalorder %s115, %s116
      %p130 = scmp.eq.s32.totalorder %s19, 1
      %p131 = por %p129, %p130
      %p133 = scmp.ne.s32.totalorder %s116, %s132
      %p134 = scmp.eq.s32.totalorder %s19, 0
      %p135 = por %p133, %p134
      %p136 = scmp.le.s32.totalorder 1, %s13
      %p137 = scmp.lt.s32.totalorder %s13, 3
      %p138 = pnand %p136, %p137
      %p139 = pneg %p138
      // Predicated region
      $region9: #{tpu_custom_call.1} parent=5 // pred_check
        _
      $region10: #{tpu_custom_call.1} parent=5 // pred_check_branch
        %141 = sbr.rel (%p138) target = $region12
      $region11: #{tpu_custom_call.1} parent=5 // pred_region
        %s142 = ssub.s32 %s13, 1
        // Predicated region
        $region13: #{tpu_custom_call.1} parent=11 // pred_check
          %p143 = pneg %p60
        $region14: #{tpu_custom_call.1} parent=11 // pred_check_branch
          %145 = sbr.rel (%p143) target = $region16
        $region15: #{tpu_custom_call.1} parent=11 // pred_region
          _
        $region16: #{tpu_custom_call.1} parent=11 // pred_fallthru
          _
        // Predicated region
        $region17: #{tpu_custom_call.1} parent=11 // pred_check
          %p146 = pneg %p81
        $region18: #{tpu_custom_call.1} parent=11 // pred_check_branch
          %148 = sbr.rel (%p146) target = $region20
        $region19: #{tpu_custom_call.1} parent=11 // pred_region
          _
        $region20: #{tpu_custom_call.1} parent=11 // pred_fallthru
          _
        // Predicated region
        $region21: #{tpu_custom_call.1} parent=11 // pred_check
          %p149 = pneg %p102
        $region22: #{tpu_custom_call.1} parent=11 // pred_check_branch
          %151 = sbr.rel (%p149) target = $region24
        $region23: #{tpu_custom_call.1} parent=11 // pred_region
          _
        $region24: #{tpu_custom_call.1} parent=11 // pred_fallthru
          _
      $region12: #{tpu_custom_call.1} parent=5 // pred_fallthru
        _
      %p152 = scmp.lt.s32.totalorder %s13, 2
      // Predicated region
      $region25: #{tpu_custom_call.1} parent=5 // pred_check
        %p153 = pneg %p152
      $region26: #{tpu_custom_call.1} parent=5 // pred_check_branch
        %155 = sbr.rel (%p153) target = $region28
      $region27: #{tpu_custom_call.1} parent=5 // pred_region
        // Predicated region
        $region29: #{tpu_custom_call.1} parent=27 // pred_check
          %p156 = pneg %p33
        $region30: #{tpu_custom_call.1} parent=27 // pred_check_branch
          %158 = sbr.rel (%p156) target = $region32
        $region31: #{tpu_custom_call.1} parent=27 // pred_region
          %p159 = scmp.lt.s32.totalorder %s13, 1
          %s160 = scalar_select %p159, %s13, 1
          %s161 = smul.addr %s160, 6
          %s162 = smul.addr %s161, 4
          %s163 = scalar_lea.vmem %s0, %s162
        $region32: #{tpu_custom_call.1} parent=27 // pred_fallthru
          _
      $region28: #{tpu_custom_call.1} parent=5 // pred_fallthru
        _
      %p164 = scmp.le.s32.totalorder 1, %s13
      %p165 = scmp.lt.s32.totalorder %s13, 3
      %p166 = pnand %p164, %p165
      %p167 = pneg %p166
      // Predicated region
      $region33: #{tpu_custom_call.1} parent=5 // pred_check
        _
      $region34: #{tpu_custom_call.1} parent=5 // pred_check_branch
        %169 = sbr.rel (%p166) target = $region36
      $region35: #{tpu_custom_call.1} parent=5 // pred_region
        %s170 = ssub.s32 %s13, 1
        %p171 = scmp.lt.s32.totalorder %s18, 1
        %s172 = scalar_select %p171, %s18, 1
        %s173 = smul.addr %s172, 6
        %s174 = smul.addr %s173, 4
        %s175 = scalar_lea.vmem %s0, %s174
        %p176 = pneg %p39
        %p177 = pneg %p36
        %p178 = pneg %p60
        %p179 = pneg %p57
        %p180 = pneg %p81
        %p181 = pneg %p78
        %p182 = pneg %p102
        %p183 = pneg %p99
        %p184 = pneg %p128
        %p185 = pneg %p125
        %s186 = sand.u32 %s115, 1
        %s187 = scalar_lea.sflag [#allocation3], %s186
        %s188 = sand.u32 %s115, 1
        %s189 = smul.addr %s188, 8
        %s190 = scalar_lea.vmem [#allocation2], %s189
        %p191 = scmp.lt.s32.totalorder %s18, 1
        %s192 = scalar_select %p191, %s18, 1
        %s193 = smul.addr %s192, 6
        %s194 = smul.addr %s193, 4
        %s195 = scalar_lea.vmem %s0, %s194
        %v197 = vld [vmem:[%s195] sm:$0xff]
        %v198 = vld [vmem:[%s195 + $0x8] sm:$0xff]
        %v199 = vld [vmem:[%s195 + $0x10] sm:$0xff]
        %v200 = vld [vmem:[%s1] sm:$0xf]
        %v201 = vld [vmem:[%s1 + $0x4] sm:$0xf]
        %v202 = vld [vmem:[%s1 + $0x8] sm:$0xf]
        %v203 = vld [vmem:[%s1 + $0xc] sm:$0xf]
        %v204 = vld [vmem:[%s1 + $0x10] sm:$0xf]
        %v205 = vld [vmem:[%s1 + $0x14] sm:$0xf]
        %v206 = vld [vmem:[%s1 + $0x18] sm:$0xf]
        %v207 = vld [vmem:[%s1 + $0x1c] sm:$0xf]
        %v208 = vld [vmem:[%s1 + $0x20] sm:$0xf]
        %v209 = vld [vmem:[%s1 + $0x24] sm:$0xf]
        %v210 = vld [vmem:[%s1 + $0x28] sm:$0xf]
        %v211 = vld [vmem:[%s1 + $0x2c] sm:$0xf]
        %v212 = vld [vmem:[%s1 + $0x30] sm:$0xf]
        %v213 = vld [vmem:[%s1 + $0x34] sm:$0xf]
        %v214 = vld [vmem:[%s1 + $0x38] sm:$0xf]
        %v215 = vld [vmem:[%s1 + $0x3c] sm:$0xf]
        %v216 = vld [vmem:[%s1 + $0x40] sm:$0xf]
        %v217 = vld [vmem:[%s1 + $0x44] sm:$0xf]
        %v218 = vld [vmem:[%s1 + $0x48] sm:$0xf]
        %v219 = vld [vmem:[%s1 + $0x4c] sm:$0xf]
        %v220 = vld [vmem:[%s1 + $0x50] sm:$0xf]
        %v221 = vld [vmem:[%s1 + $0x54] sm:$0xf]
        %v222 = vld [vmem:[%s1 + $0x58] sm:$0xf]
        %v223 = vld [vmem:[%s1 + $0x5c] sm:$0xf]
        %v224 = vld [vmem:[%s1 + $0x60] sm:$0xf]
        %v225 = vld [vmem:[%s1 + $0x64] sm:$0xf]
        %v226 = vld [vmem:[%s1 + $0x68] sm:$0xf]
        %v227 = vld [vmem:[%s1 + $0x6c] sm:$0xf]
        %v228 = vld [vmem:[%s1 + $0x70] sm:$0xf]
        %v229 = vld [vmem:[%s1 + $0x74] sm:$0xf]
        %v230 = vld [vmem:[%s1 + $0x78] sm:$0xf]
        %v231 = vld [vmem:[%s1 + $0x7c] sm:$0xf]
        %v232 = vld [vmem:[%s1 + $0x80] sm:$0xf]
        %v233 = vld [vmem:[%s1 + $0x84] sm:$0xf]
        %v234 = vld [vmem:[%s1 + $0x88] sm:$0xf]
        %v235 = vld [vmem:[%s1 + $0x8c] sm:$0xf]
        %v236 = vld [vmem:[%s1 + $0x90] sm:$0xf]
        %v237 = vld [vmem:[%s1 + $0x94] sm:$0xf]
        %v238 = vld [vmem:[%s1 + $0x98] sm:$0xf]
        %v239 = vld [vmem:[%s1 + $0x9c] sm:$0xf]
        %v240 = vld [vmem:[%s1 + $0xa0] sm:$0xf]
        %v241 = vld [vmem:[%s1 + $0xa4] sm:$0xf]
        %v242 = vld [vmem:[%s1 + $0xa8] sm:$0xf]
        %v243 = vld [vmem:[%s1 + $0xac] sm:$0xf]
        %v244 = vld [vmem:[%s1 + $0xb0] sm:$0xf]
        %v245 = vld [vmem:[%s1 + $0xb4] sm:$0xf]
        %v246 = vld [vmem:[%s1 + $0xb8] sm:$0xf]
        %v247 = vld [vmem:[%s1 + $0xbc] sm:$0xf]
        %v248 = vld [vmem:[%s1 + $0xc0] sm:$0xf]
        %v249 = vld [vmem:[%s1 + $0xc4] sm:$0xf]
        %v250 = vld [vmem:[%s1 + $0xc8] sm:$0xf]
        %v251 = vld [vmem:[%s1 + $0xcc] sm:$0xf]
        %v252 = vld [vmem:[%s1 + $0xd0] sm:$0xf]
        %v253 = vld [vmem:[%s1 + $0xd4] sm:$0xf]
        %v254 = vld [vmem:[%s1 + $0xd8] sm:$0xf]
        %v255 = vld [vmem:[%s1 + $0xdc] sm:$0xf]
        %v256 = vld [vmem:[%s1 + $0xe0] sm:$0xf]
        %v257 = vld [vmem:[%s1 + $0xe4] sm:$0xf]
        %v258 = vld [vmem:[%s1 + $0xe8] sm:$0xf]
        %v259 = vld [vmem:[%s1 + $0xec] sm:$0xf]
        %v260 = vld [vmem:[%s1 + $0xf0] sm:$0xf]
        %v261 = vld [vmem:[%s1 + $0xf4] sm:$0xf]
        %v262 = vld [vmem:[%s1 + $0xf8] sm:$0xf]
        %v263 = vld [vmem:[%s1 + $0xfc] sm:$0xf]
        %v264 = vld [vmem:[%s1 + $0x100] sm:$0xf]
        %v265 = vld [vmem:[%s1 + $0x104] sm:$0xf]
        %v266 = vld [vmem:[%s1 + $0x108] sm:$0xf]
        %v267 = vld [vmem:[%s1 + $0x10c] sm:$0xf]
        %v268 = vld [vmem:[%s1 + $0x110] sm:$0xf]
        %v269 = vld [vmem:[%s1 + $0x114] sm:$0xf]
        %v270 = vld [vmem:[%s1 + $0x118] sm:$0xf]
        %v271 = vld [vmem:[%s1 + $0x11c] sm:$0xf]
        %v272 = vld [vmem:[%s1 + $0x120] sm:$0xf]
        %v273 = vld [vmem:[%s1 + $0x124] sm:$0xf]
        %v274 = vld [vmem:[%s1 + $0x128] sm:$0xf]
        %v275 = vld [vmem:[%s1 + $0x12c] sm:$0xf]
        %v276 = vld [vmem:[%s1 + $0x130] sm:$0xf]
        %v277 = vld [vmem:[%s1 + $0x134] sm:$0xf]
        %v278 = vld [vmem:[%s1 + $0x138] sm:$0xf]
        %v279 = vld [vmem:[%s1 + $0x13c] sm:$0xf]
        %v280 = vld [vmem:[%s1 + $0x140] sm:$0xf]
        %v281 = vld [vmem:[%s1 + $0x144] sm:$0xf]
        %v282 = vld [vmem:[%s1 + $0x148] sm:$0xf]
        %v283 = vld [vmem:[%s1 + $0x14c] sm:$0xf]
        %v284 = vld [vmem:[%s1 + $0x150] sm:$0xf]
        %v285 = vld [vmem:[%s1 + $0x154] sm:$0xf]
        %v286 = vld [vmem:[%s1 + $0x158] sm:$0xf]
        %v287 = vld [vmem:[%s1 + $0x15c] sm:$0xf]
        %v288 = vld [vmem:[%s1 + $0x160] sm:$0xf]
        %v289 = vld [vmem:[%s1 + $0x164] sm:$0xf]
        %v290 = vld [vmem:[%s1 + $0x168] sm:$0xf]
        %v291 = vld [vmem:[%s1 + $0x16c] sm:$0xf]
        %v292 = vld [vmem:[%s1 + $0x170] sm:$0xf]
        %v293 = vld [vmem:[%s1 + $0x174] sm:$0xf]
        %v294 = vld [vmem:[%s1 + $0x178] sm:$0xf]
        %v295 = vld [vmem:[%s1 + $0x17c] sm:$0xf]
        %v299 = vunpack.c.l.b16 %v197
        %v300 = vunpack.c.h.b16 %v197
        %v301 = vunpack.c.l.b16 %v198
        %v302 = vunpack.c.h.b16 %v198
        %v303 = vunpack.c.l.b16 %v199
        %v304 = vunpack.c.h.b16 %v199
        %v305 = vpack.c.b16 %v299, %v299
        %v306 = vpack.c.b16 %v300, %v300
        %v307 = vpack.c.b16 %v301, %v301
        %v308 = vpack.c.b16 %v302, %v302
        %v309 = vpack.c.b16 %v303, %v303
        %v310 = vpack.c.b16 %v304, %v304
        %v413 = vunpack.c.l.b16 %v200
        %v414 = vunpack.c.l.b16 %v201
        %v415 = vunpack.c.l.b16 %v202
        %v416 = vunpack.c.l.b16 %v203
        %v417 = vunpack.c.l.b16 %v204
        %v418 = vunpack.c.l.b16 %v205
        %v419 = vunpack.c.l.b16 %v206
        %v420 = vunpack.c.l.b16 %v207
        %v421 = vunpack.c.l.b16 %v208
        %v422 = vunpack.c.l.b16 %v209
        %v423 = vunpack.c.l.b16 %v210
        %v424 = vunpack.c.l.b16 %v211
        %v425 = vunpack.c.l.b16 %v212
        %v426 = vunpack.c.l.b16 %v213
        %v427 = vunpack.c.l.b16 %v214
        %v428 = vunpack.c.l.b16 %v215
        %v429 = vunpack.c.l.b16 %v216
        %v430 = vunpack.c.l.b16 %v217
        %v431 = vunpack.c.l.b16 %v218
        %v432 = vunpack.c.l.b16 %v219
        %v433 = vunpack.c.l.b16 %v220
        %v434 = vunpack.c.l.b16 %v221
        %v435 = vunpack.c.l.b16 %v222
        %v436 = vunpack.c.l.b16 %v223
        %v437 = vunpack.c.l.b16 %v224
        %v438 = vunpack.c.l.b16 %v225
        %v439 = vunpack.c.l.b16 %v226
        %v440 = vunpack.c.l.b16 %v227
        %v441 = vunpack.c.l.b16 %v228
        %v442 = vunpack.c.l.b16 %v229
        %v443 = vunpack.c.l.b16 %v230
        %v444 = vunpack.c.l.b16 %v231
        %v445 = vunpack.c.l.b16 %v232
        %v446 = vunpack.c.l.b16 %v233
        %v447 = vunpack.c.l.b16 %v234
        %v448 = vunpack.c.l.b16 %v235
        %v449 = vunpack.c.l.b16 %v236
        %v450 = vunpack.c.l.b16 %v237
        %v451 = vunpack.c.l.b16 %v238
        %v452 = vunpack.c.l.b16 %v239
        %v453 = vunpack.c.l.b16 %v240
        %v454 = vunpack.c.l.b16 %v241
        %v455 = vunpack.c.l.b16 %v242
        %v456 = vunpack.c.l.b16 %v243
        %v457 = vunpack.c.l.b16 %v244
        %v458 = vunpack.c.l.b16 %v245
        %v459 = vunpack.c.l.b16 %v246
        %v460 = vunpack.c.l.b16 %v247
        %v461 = vunpack.c.l.b16 %v248
        %v462 = vunpack.c.l.b16 %v249
        %v463 = vunpack.c.l.b16 %v250
        %v464 = vunpack.c.l.b16 %v251
        %v465 = vunpack.c.l.b16 %v252
        %v466 = vunpack.c.l.b16 %v253
        %v467 = vunpack.c.l.b16 %v254
        %v468 = vunpack.c.l.b16 %v255
        %v469 = vunpack.c.l.b16 %v256
        %v470 = vunpack.c.l.b16 %v257
        %v471 = vunpack.c.l.b16 %v258
        %v472 = vunpack.c.l.b16 %v259
        %v473 = vunpack.c.l.b16 %v260
        %v474 = vunpack.c.l.b16 %v261
        %v475 = vunpack.c.l.b16 %v262
        %v476 = vunpack.c.l.b16 %v263
        %v477 = vunpack.c.l.b16 %v264
        %v478 = vunpack.c.l.b16 %v265
        %v479 = vunpack.c.l.b16 %v266
        %v480 = vunpack.c.l.b16 %v267
        %v481 = vunpack.c.l.b16 %v268
        %v482 = vunpack.c.l.b16 %v269
        %v483 = vunpack.c.l.b16 %v270
        %v484 = vunpack.c.l.b16 %v271
        %v485 = vunpack.c.l.b16 %v272
        %v486 = vunpack.c.l.b16 %v273
        %v487 = vunpack.c.l.b16 %v274
        %v488 = vunpack.c.l.b16 %v275
        %v489 = vunpack.c.l.b16 %v276
        %v490 = vunpack.c.l.b16 %v277
        %v491 = vunpack.c.l.b16 %v278
        %v492 = vunpack.c.l.b16 %v279
        %v493 = vunpack.c.l.b16 %v280
        %v494 = vunpack.c.l.b16 %v281
        %v495 = vunpack.c.l.b16 %v282
        %v496 = vunpack.c.l.b16 %v283
        %v497 = vunpack.c.l.b16 %v284
        %v498 = vunpack.c.l.b16 %v285
        %v499 = vunpack.c.l.b16 %v286
        %v500 = vunpack.c.l.b16 %v287
        %v501 = vunpack.c.l.b16 %v288
        %v502 = vunpack.c.l.b16 %v289
        %v503 = vunpack.c.l.b16 %v290
        %v504 = vunpack.c.l.b16 %v291
        %v505 = vunpack.c.l.b16 %v292
        %v506 = vunpack.c.l.b16 %v293
        %v507 = vunpack.c.l.b16 %v294
        %v508 = vunpack.c.l.b16 %v295
        %v509 = vpack.c.b16 %v414, %v413
        %v510 = vpack.c.b16 %v416, %v415
        %v511 = vpack.c.b16 %v418, %v417
        %v512 = vpack.c.b16 %v420, %v419
        %v513 = vpack.c.b16 %v422, %v421
        %v514 = vpack.c.b16 %v424, %v423
        %v515 = vpack.c.b16 %v426, %v425
        %v516 = vpack.c.b16 %v428, %v427
        %v517 = vpack.c.b16 %v430, %v429
        %v518 = vpack.c.b16 %v432, %v431
        %v519 = vpack.c.b16 %v434, %v433
        %v520 = vpack.c.b16 %v436, %v435
        %v521 = vpack.c.b16 %v438, %v437
        %v522 = vpack.c.b16 %v440, %v439
        %v523 = vpack.c.b16 %v442, %v441
        %v524 = vpack.c.b16 %v444, %v443
        %v525 = vpack.c.b16 %v446, %v445
        %v526 = vpack.c.b16 %v448, %v447
        %v527 = vpack.c.b16 %v450, %v449
        %v528 = vpack.c.b16 %v452, %v451
        %v529 = vpack.c.b16 %v454, %v453
        %v530 = vpack.c.b16 %v456, %v455
        %v531 = vpack.c.b16 %v458, %v457
        %v532 = vpack.c.b16 %v460, %v459
        %v533 = vpack.c.b16 %v462, %v461
        %v534 = vpack.c.b16 %v464, %v463
        %v535 = vpack.c.b16 %v466, %v465
        %v536 = vpack.c.b16 %v468, %v467
        %v537 = vpack.c.b16 %v470, %v469
        %v538 = vpack.c.b16 %v472, %v471
        %v539 = vpack.c.b16 %v474, %v473
        %v540 = vpack.c.b16 %v476, %v475
        %v541 = vpack.c.b16 %v478, %v477
        %v542 = vpack.c.b16 %v480, %v479
        %v543 = vpack.c.b16 %v482, %v481
        %v544 = vpack.c.b16 %v484, %v483
        %v545 = vpack.c.b16 %v486, %v485
        %v546 = vpack.c.b16 %v488, %v487
        %v547 = vpack.c.b16 %v490, %v489
        %v548 = vpack.c.b16 %v492, %v491
        %v549 = vpack.c.b16 %v494, %v493
        %v550 = vpack.c.b16 %v496, %v495
        %v551 = vpack.c.b16 %v498, %v497
        %v552 = vpack.c.b16 %v500, %v499
        %v553 = vpack.c.b16 %v502, %v501
        %v554 = vpack.c.b16 %v504, %v503
        %v555 = vpack.c.b16 %v506, %v505
        %v556 = vpack.c.b16 %v508, %v507
        %605 = vmatprep.subr.bf16.mxu0 0
        %606 = vmatpush1.bf16.msra.mxu0 %v509
        %607 = vmatprep.subr.bf16.mxu0 0
        %608 = vmatpush1.bf16.msra.mxu0 %v510
        %609 = vmatprep.subr.bf16.mxu0 0
        %610 = vmatpush1.bf16.msra.mxu0 %v511
        %611 = vmatprep.subr.bf16.mxu0 0
        %612 = vmatpush1.bf16.msra.mxu0 %v512
        %613 = vmatprep.subr.bf16.mxu0 0
        %614 = vmatpush1.bf16.msra.mxu0 %v513
        %615 = vmatprep.subr.bf16.mxu0 0
        %616 = vmatpush1.bf16.msra.mxu0 %v514
        %617 = vmatprep.subr.bf16.mxu0 0
        %618 = vmatpush1.bf16.msra.mxu0 %v515
        %619 = vmatprep.subr.bf16.mxu0 0
        %620 = vmatpush1.bf16.msra.mxu0 %v516
        %621 = vmatprep.subr.bf16.mxu0 0
        %622 = vmatpush1.bf16.msra.mxu0 %v517
        %623 = vmatprep.subr.bf16.mxu0 0
        %624 = vmatpush1.bf16.msra.mxu0 %v518
        %625 = vmatprep.subr.bf16.mxu0 0
        %626 = vmatpush1.bf16.msra.mxu0 %v519
        %627 = vmatprep.subr.bf16.mxu0 0
        %628 = vmatpush1.bf16.msra.mxu0 %v520
        %629 = vmatprep.subr.bf16.mxu0 0
        %630 = vmatpush1.bf16.msra.mxu0 %v521
        %631 = vmatprep.subr.bf16.mxu0 0
        %632 = vmatpush1.bf16.msra.mxu0 %v522
        %633 = vmatprep.subr.bf16.mxu0 0
        %634 = vmatpush1.bf16.msra.mxu0 %v523
        %635 = vmatprep.subr.bf16.mxu0 0
        %636 = vmatpush1.bf16.msra.mxu0 %v524
        %637 = vmatprep.mubr.bf16.mxu0 %v306
        %638 = vmatmul.mubr.bf16.gmra.mrb[0].mxu0 %v305
        %v639 = vpop.f32.mrb[0].mxu0
        %v640 = vadd.f32 0.0, %v639
        %v641 = vpop.f32.mrb[0].mxu0
        %v642 = vpop.f32.mrb[0].mxu0
        %v643 = vpop.f32.mrb[0].mxu0
        %644 = vdwg.mxu0
        %645 = vmatprep.subr.bf16.mxu0 0
        %646 = vmatpush1.bf16.msra.mxu0 %v525
        %647 = vmatprep.subr.bf16.mxu0 0
        %648 = vmatpush1.bf16.msra.mxu0 %v526
        %649 = vmatprep.subr.bf16.mxu0 0
        %650 = vmatpush1.bf16.msra.mxu0 %v527
        %651 = vmatprep.subr.bf16.mxu0 0
        %652 = vmatpush1.bf16.msra.mxu0 %v528
        %653 = vmatprep.subr.bf16.mxu0 0
        %654 = vmatpush1.bf16.msra.mxu0 %v529
        %655 = vmatprep.subr.bf16.mxu0 0
        %656 = vmatpush1.bf16.msra.mxu0 %v530
        %657 = vmatprep.subr.bf16.mxu0 0
        %658 = vmatpush1.bf16.msra.mxu0 %v531
        %659 = vmatprep.subr.bf16.mxu0 0
        %660 = vmatpush1.bf16.msra.mxu0 %v532
        %661 = vmatprep.subr.bf16.mxu0 0
        %662 = vmatpush1.bf16.msra.mxu0 %v533
        %663 = vmatprep.subr.bf16.mxu0 0
        %664 = vmatpush1.bf16.msra.mxu0 %v534
        %665 = vmatprep.subr.bf16.mxu0 0
        %666 = vmatpush1.bf16.msra.mxu0 %v535
        %667 = vmatprep.subr.bf16.mxu0 0
        %668 = vmatpush1.bf16.msra.mxu0 %v536
        %669 = vmatprep.subr.bf16.mxu0 0
        %670 = vmatpush1.bf16.msra.mxu0 %v537
        %671 = vmatprep.subr.bf16.mxu0 0
        %672 = vmatpush1.bf16.msra.mxu0 %v538
        %673 = vmatprep.subr.bf16.mxu0 0
        %674 = vmatpush1.bf16.msra.mxu0 %v539
        %675 = vmatprep.subr.bf16.mxu0 0
        %676 = vmatpush1.bf16.msra.mxu0 %v540
        %677 = vmatprep.mubr.bf16.mxu0 %v308
        %678 = vmatmul.mubr.bf16.gmra.mrb[0].mxu0 %v307
        %v679 = vpop.f32.mrb[0].mxu0
        %v680 = vadd.f32 %v640, %v679
        %v681 = vpop.f32.mrb[0].mxu0
        %v682 = vpop.f32.mrb[0].mxu0
        %v683 = vpop.f32.mrb[0].mxu0
        %684 = vdwg.mxu0
        %685 = vmatprep.subr.bf16.mxu0 0
        %686 = vmatpush1.bf16.msra.mxu0 %v541
        %687 = vmatprep.subr.bf16.mxu0 0
        %688 = vmatpush1.bf16.msra.mxu0 %v542
        %689 = vmatprep.subr.bf16.mxu0 0
        %690 = vmatpush1.bf16.msra.mxu0 %v543
        %691 = vmatprep.subr.bf16.mxu0 0
        %692 = vmatpush1.bf16.msra.mxu0 %v544
        %693 = vmatprep.subr.bf16.mxu0 0
        %694 = vmatpush1.bf16.msra.mxu0 %v545
        %695 = vmatprep.subr.bf16.mxu0 0
        %696 = vmatpush1.bf16.msra.mxu0 %v546
        %697 = vmatprep.subr.bf16.mxu0 0
        %698 = vmatpush1.bf16.msra.mxu0 %v547
        %699 = vmatprep.subr.bf16.mxu0 0
        %700 = vmatpush1.bf16.msra.mxu0 %v548
        %701 = vmatprep.subr.bf16.mxu0 0
        %702 = vmatpush1.bf16.msra.mxu0 %v549
        %703 = vmatprep.subr.bf16.mxu0 0
        %704 = vmatpush1.bf16.msra.mxu0 %v550
        %705 = vmatprep.subr.bf16.mxu0 0
        %706 = vmatpush1.bf16.msra.mxu0 %v551
        %707 = vmatprep.subr.bf16.mxu0 0
        %708 = vmatpush1.bf16.msra.mxu0 %v552
        %709 = vmatprep.subr.bf16.mxu0 0
        %710 = vmatpush1.bf16.msra.mxu0 %v553
        %711 = vmatprep.subr.bf16.mxu0 0
        %712 = vmatpush1.bf16.msra.mxu0 %v554
        %713 = vmatprep.subr.bf16.mxu0 0
        %714 = vmatpush1.bf16.msra.mxu0 %v555
        %715 = vmatprep.subr.bf16.mxu0 0
        %716 = vmatpush1.bf16.msra.mxu0 %v556
        %717 = vmatprep.mubr.bf16.mxu0 %v310
        %718 = vmatmul.mubr.bf16.gmra.mrb[0].mxu0 %v309
        %v719 = vpop.f32.mrb[0].mxu0
        %v720 = vadd.f32 %v680, %v719
        %v721 = vpop.f32.mrb[0].mxu0
        %v722 = vpop.f32.mrb[0].mxu0
        %v723 = vpop.f32.mrb[0].mxu0
        %724 = vdwg.mxu0
        %vm725 = vcmask 261120
        %v726 = vsel %vm725, %v720, 0.0
        %727 = vadd.xlane.f32.xlu0 %v726
        %v728 = vpop.xlane.xlu0 %727
        %v729 = vrcp.pop 32.0
        %v730 = vmul.f32 %v728, %v729
        %v731 = vmul.f32 %v720, %v720
        %v732 = vsel %vm725, %v731, 0.0
        %733 = vadd.xlane.f32.xlu0 %v732
        %v734 = vpop.xlane.xlu0 %733
        %v735 = vmul.f32 %v734, %v729
        %v736 = vmul.f32 %v730, %v730
        %v737 = vsub.f32 %v735, %v736
        %v738 = vmax.f32 %v737, 0.0
        %v739 = vsub.f32 %v720, %v730
        %v740 = vadd.f32 %v738, 1e-05
        %v741 = vrsqrt.pop %v740
        %v742 = vmul.f32 %v739, %v741
        %v743 = vpack.c.bf16 %v742, %v742
        %v744 = vld [vmem:[%s2] sm:$0xf]
        %v745 = vld [vmem:[%s2 + $0x4] sm:$0xf]
        %v746 = vld [vmem:[%s2 + $0x8] sm:$0xf]
        %v747 = vld [vmem:[%s2 + $0xc] sm:$0xf]
        %v748 = vld [vmem:[%s3] sm:$0x1]
        %v750 = vlaneseq
        %v751 = vshrl.u32 %v750, 7
        %v752 = vsub.s32 0, %v751
        %v753 = vrot.slane %v748, %v752
        %v759 = vunpack.c.l.b16 %v744
        %v760 = vunpack.c.l.b16 %v745
        %v761 = vunpack.c.l.b16 %v746
        %v762 = vunpack.c.l.b16 %v747
        %v763 = vpack.c.b16 %v760, %v759
        %v764 = vpack.c.b16 %v762, %v761
        %v768 = vsel %vm725, %v743, 0
        %770 = vmatprep.subr.bf16.mxu0 0
        %771 = vmatpush1.bf16.msra.mxu0 %v763
        %772 = vmatprep.subr.bf16.mxu0 0
        %773 = vmatpush1.bf16.msra.mxu0 %v764
        %774 = vmatprep.subr.bf16.mxu0 0
        %775 = vmatpush1.bf16.msra.mxu0 0
        %776 = vmatprep.subr.bf16.mxu0 0
        %777 = vmatpush1.bf16.msra.mxu0 0
        %778 = vmatprep.subr.bf16.mxu0 0
        %779 = vmatpush1.bf16.msra.mxu0 0
        %780 = vmatprep.subr.bf16.mxu0 0
        %781 = vmatpush1.bf16.msra.mxu0 0
        %782 = vmatprep.subr.bf16.mxu0 0
        %783 = vmatpush1.bf16.msra.mxu0 0
        %784 = vmatprep.subr.bf16.mxu0 0
        %785 = vmatpush1.bf16.msra.mxu0 0
        %786 = vmatprep.subr.bf16.mxu0 0
        %787 = vmatpush1.bf16.msra.mxu0 0
        %788 = vmatprep.subr.bf16.mxu0 0
        %789 = vmatpush1.bf16.msra.mxu0 0
        %790 = vmatprep.subr.bf16.mxu0 0
        %791 = vmatpush1.bf16.msra.mxu0 0
        %792 = vmatprep.subr.bf16.mxu0 0
        %793 = vmatpush1.bf16.msra.mxu0 0
        %794 = vmatprep.subr.bf16.mxu0 0
        %795 = vmatpush1.bf16.msra.mxu0 0
        %796 = vmatprep.subr.bf16.mxu0 0
        %797 = vmatpush1.bf16.msra.mxu0 0
        %798 = vmatprep.subr.bf16.mxu0 0
        %799 = vmatpush1.bf16.msra.mxu0 0
        %800 = vmatprep.subr.bf16.mxu0 0
        %801 = vmatpush1.bf16.msra.mxu0 0
        %802 = vmatprep.mubr.bf16.mxu0 0
        %803 = vmatmul.mubr.bf16.gmra.mrb[0].mxu0 %v768
        %v804 = vpop.f32.mrb[0].mxu0
        %v805 = vadd.f32 %v753, %v804
        %v806 = vpop.f32.mrb[0].mxu0
        %v807 = vpop.f32.mrb[0].mxu0
        %v808 = vpop.f32.mrb[0].mxu0
        %809 = vdwg.mxu0
        %810 = vst [vmem:[%s190] sm:$0xff] %v805
        %s811 = sand.u32 %s115, 1
        %s812 = scalar_lea.sflag [#allocation3], %s811
        %s813 = sand.u32 %s115, 1
        %s814 = smul.addr %s813, 8
        %s815 = scalar_lea.vmem [#allocation2], %s814
        // Predicated region
        $region37: #{tpu_custom_call.1} parent=35 // pred_check
          %p816 = pneg %p125
        $region38: #{tpu_custom_call.1} parent=35 // pred_check_branch
          %818 = sbr.rel (%p816) target = $region40
        $region39: #{tpu_custom_call.1} parent=35 // pred_region
          %s820 = ssub.s32 128, 128
          %821 = vsyncadd %s812, %s820
          %s822 = smul.addr %s18, 128
          %s823 = scalar_lea.hbm %s4, %s822
          %s825 = sshll.u32 %s815, 4
          %s826 = int_to_ptr.vmem [resolvable:$true] %s825
          %828 = dma.vmem_to_hbm [thread:$0]  %s826, 128, %s823, %s812
        $region40: #{tpu_custom_call.1} parent=35 // pred_fallthru
          _
      $region36: #{tpu_custom_call.1} parent=5 // pred_fallthru
        _
      %p829 = scmp.le.s32.totalorder 2, %s13
      // Predicated region
      $region41: #{tpu_custom_call.1} parent=5 // pred_check
        %p830 = pneg %p829
      $region42: #{tpu_custom_call.1} parent=5 // pred_check_branch
        %832 = sbr.rel (%p830) target = $region44
      $region43: #{tpu_custom_call.1} parent=5 // pred_region
        %s833 = ssub.s32 %s13, 2
        // Predicated region
        $region45: #{tpu_custom_call.1} parent=43 // pred_check
          %p834 = pneg %p131
        $region46: #{tpu_custom_call.1} parent=43 // pred_check_branch
          %836 = sbr.rel (%p834) target = $region48
        $region47: #{tpu_custom_call.1} parent=43 // pred_region
          %s837 = sand.u32 %s116, 1
          %s838 = scalar_lea.sflag [#allocation3], %s837
          %s839 = sand.u32 %s116, 1
          %s840 = smul.addr %s839, 8
          %s841 = scalar_lea.vmem [#allocation2], %s840
          %842 = dma.done %s838, 128
        $region48: #{tpu_custom_call.1} parent=43 // pred_fallthru
          _
      $region44: #{tpu_custom_call.1} parent=5 // pred_fallthru
        _
    $region6: #{tpu_custom_call.1} parent=1 // loop_footer
      %s17 = sadd.s32 1, %s13
    $region7: #{tpu_custom_call.1} parent=1 // loop_footer_branch
      %12 = sbr.rel target = $region3
    $region8: #{tpu_custom_call.1} parent=1 // loop_exit
      _
    %843 = vsyncpa [#allocation3], 1
    %s844 = scalar_lea.sflag [#allocation3], 1
    %845 = vsyncpa %s844, 1

// kernel: tpu_custom_call.1
$region0: #{tpu_custom_call.1}
  #allocation0 [shape = 'u32[]', space=smem, size = 0x4, offset = 0x4, fixed_abs, tag = 'smem constant byte address 0x4 - core index']
  #allocation1 [shape = 'u32[144,128]{1,0:T(1,128)}', space=vmem, size = 0x12000, scoped, tag = 'internal scratch']
  %s0 = inlined_call_operand.vmem [shape: bf16[16,768], index: 0, kind: input, shape index: {}]
  %s1 = inlined_call_operand.vmem [shape: bf16[768,32], index: 1, kind: input, shape index: {}]
  %s2 = inlined_call_operand.vmem [shape: bf16[32,128], index: 2, kind: input, shape index: {}]
  %s3 = inlined_call_operand.vmem [shape: f32[1,128], index: 3, kind: input, shape index: {}]
  %s4 = inlined_call_operand.hbm [shape: f32[16,128], index: 4, kind: output, shape index: {}]
  %s5 = sld [smem:[#allocation0]]
  $region49: #{tpu_custom_call.1} parent=0
    _
  %s7 = ssub.s32 1, %s5
  %s8 = scalar_select 0, %s7, %s5
  $region1: #{tpu_custom_call.1} parent=0
    #allocation2 [shape = 'u8[8192]{0}', space=vmem, size = 0x2000, scoped, tag = 'output window, operand 0']
    #allocation3 [shape = 's32[2]{0}', space=sflag, size = 0x8, scoped, tag = 'scoped memory for tpu_custom_call.1']
    %9 = vsyncpa [#allocation3], 0
    %s10 = scalar_lea.sflag [#allocation3], 1
    %11 = vsyncpa %s10, 0
    loop: start=0, step=1, limit=4
    $region2: #{tpu_custom_call.1} parent=1 // loop_pre_header
      _
    $region3: #{tpu_custom_call.1} parent=1 // loop_header
      %s13 = sphi 0, %s17
      %p14 = scmp.ge.s32.totalorder %s13, 4
      %s23 = sphi 0, %s25
      %s26 = sphi 0, %s23
      %s27 = sphi 0, %s26
      %s43 = sphi 0, %s27
      %s47 = sphi 0, %s47
      %s49 = sphi 0, %s47
      %s50 = sphi 0, %s49
      %s64 = sphi 0, %s50
      %s68 = sphi 0, %s68
      %s70 = sphi 0, %s68
      %s71 = sphi 0, %s70
      %s85 = sphi 0, %s71
      %s89 = sphi 0, %s89
      %s91 = sphi 0, %s89
      %s92 = sphi 0, %s91
      %s106 = sphi 0, %s92
      %s112 = sphi 0, %s114
      %s115 = sphi 0, %s112
      %s116 = sphi 0, %s115
      %s132 = sphi 0, %s116
    $region4: #{tpu_custom_call.1} parent=1 // loop_header_branch
      %16 = sbr.rel (%p14) target = $region8
    $region5: #{tpu_custom_call.1} parent=1 // loop_body
      %s18 = ssub.s32 %s13, 1
      %s19 = ssub.s32 %s13, 2
      %s20 = sadd.s32 %s13, 1
      %s21 = ssub.s32 %s13, %s20
      %p22 = scmp.eq.s32.totalorder %s21, 0
      %s24 = sadd.s32 %s23, 1
      %s25 = scalar_select %p22, %s23, %s24
      %p28 = pneg %p22
      %p29 = scmp.eq.s32.totalorder %s13, 1
      %p30 = por %p28, %p29
      %p31 = scmp.ne.s32.totalorder %s23, %s26
      %p32 = scmp.eq.s32.totalorder %s13, 0
      %p33 = por %p31, %p32
      %p34 = scmp.ne.s32.totalorder %s23, %s26
      %p35 = scmp.eq.s32.totalorder %s18, 1
      %p36 = por %p34, %p35
      %p37 = scmp.ne.s32.totalorder %s26, %s27
      %p38 = scmp.eq.s32.totalorder %s18, 0
      %p39 = por %p37, %p38
      %p40 = scmp.ne.s32.totalorder %s26, %s27
      %p41 = scmp.eq.s32.totalorder %s19, 1
      %p42 = por %p40, %p41
      %p44 = scmp.ne.s32.totalorder %s27, %s43
      %p45 = scmp.eq.s32.totalorder %s19, 0
      %p46 = por %p44, %p45
      %s48 = sadd.s32 %s47, 1
      %p51 = scmp.eq.s32.totalorder %s13, 1
      %p52 = scmp.ne.s32.totalorder %s47, %s49
      %p53 = scmp.eq.s32.totalorder %s13, 0
      %p54 = por %p52, %p53
      %p55 = scmp.ne.s32.totalorder %s47, %s49
      %p56 = scmp.eq.s32.totalorder %s18, 1
      %p57 = por %p55, %p56
      %p58 = scmp.ne.s32.totalorder %s49, %s50
      %p59 = scmp.eq.s32.totalorder %s18, 0
      %p60 = por %p58, %p59
      %p61 = scmp.ne.s32.totalorder %s49, %s50
      %p62 = scmp.eq.s32.totalorder %s19, 1
      %p63 = por %p61, %p62
      %p65 = scmp.ne.s32.totalorder %s50, %s64
      %p66 = scmp.eq.s32.totalorder %s19, 0
      %p67 = por %p65, %p66
      %s69 = sadd.s32 %s68, 1
      %p72 = scmp.eq.s32.totalorder %s13, 1
      %p73 = scmp.ne.s32.totalorder %s68, %s70
      %p74 = scmp.eq.s32.totalorder %s13, 0
      %p75 = por %p73, %p74
      %p76 = scmp.ne.s32.totalorder %s68, %s70
      %p77 = scmp.eq.s32.totalorder %s18, 1
      %p78 = por %p76, %p77
      %p79 = scmp.ne.s32.totalorder %s70, %s71
      %p80 = scmp.eq.s32.totalorder %s18, 0
      %p81 = por %p79, %p80
      %p82 = scmp.ne.s32.totalorder %s70, %s71
      %p83 = scmp.eq.s32.totalorder %s19, 1
      %p84 = por %p82, %p83
      %p86 = scmp.ne.s32.totalorder %s71, %s85
      %p87 = scmp.eq.s32.totalorder %s19, 0
      %p88 = por %p86, %p87
      %s90 = sadd.s32 %s89, 1
      %p93 = scmp.eq.s32.totalorder %s13, 1
      %p94 = scmp.ne.s32.totalorder %s89, %s91
      %p95 = scmp.eq.s32.totalorder %s13, 0
      %p96 = por %p94, %p95
      %p97 = scmp.ne.s32.totalorder %s89, %s91
      %p98 = scmp.eq.s32.totalorder %s18, 1
      %p99 = por %p97, %p98
      %p100 = scmp.ne.s32.totalorder %s91, %s92
      %p101 = scmp.eq.s32.totalorder %s18, 0
      %p102 = por %p100, %p101
      %p103 = scmp.ne.s32.totalorder %s91, %s92
      %p104 = scmp.eq.s32.totalorder %s19, 1
      %p105 = por %p103, %p104
      %p107 = scmp.ne.s32.totalorder %s92, %s106
      %p108 = scmp.eq.s32.totalorder %s19, 0
      %p109 = por %p107, %p108
      %s110 = ssub.s32 %s13, %s20
      %p111 = scmp.eq.s32.totalorder %s110, 0
      %s113 = sadd.s32 %s112, 1
      %s114 = scalar_select %p111, %s112, %s113
      %p117 = pneg %p111
      %p118 = scmp.eq.s32.totalorder %s13, 1
      %p119 = por %p117, %p118
      %p120 = scmp.ne.s32.totalorder %s112, %s115
      %p121 = scmp.eq.s32.totalorder %s13, 0
      %p122 = por %p120, %p121
      %p123 = scmp.ne.s32.totalorder %s112, %s115
      %p124 = scmp.eq.s32.totalorder %s18, 1
      %p125 = por %p123, %p124
      %p126 = scmp.ne.s32.totalorder %s115, %s116
      %p127 = scmp.eq.s32.totalorder %s18, 0
      %p128 = por %p126, %p127
      %p129 = scmp.ne.s32.totalorder %s115, %s116
      %p130 = scmp.eq.s32.totalorder %s19, 1
      %p131 = por %p129, %p130
      %p133 = scmp.ne.s32.totalorder %s116, %s132
      %p134 = scmp.eq.s32.totalorder %s19, 0
      %p135 = por %p133, %p134
      %p136 = scmp.le.s32.totalorder 1, %s13
      %p137 = scmp.lt.s32.totalorder %s13, 3
      %p138 = pnand %p136, %p137
      %p139 = pneg %p138
      // Predicated region
      $region9: #{tpu_custom_call.1} parent=5 // pred_check
        _
      $region10: #{tpu_custom_call.1} parent=5 // pred_check_branch
        %141 = sbr.rel (%p138) target = $region12
      $region11: #{tpu_custom_call.1} parent=5 // pred_region
        %s142 = ssub.s32 %s13, 1
        // Predicated region
        $region13: #{tpu_custom_call.1} parent=11 // pred_check
          %p143 = pneg %p60
        $region14: #{tpu_custom_call.1} parent=11 // pred_check_branch
          %145 = sbr.rel (%p143) target = $region16
        $region15: #{tpu_custom_call.1} parent=11 // pred_region
          _
        $region16: #{tpu_custom_call.1} parent=11 // pred_fallthru
          _
        // Predicated region
        $region17: #{tpu_custom_call.1} parent=11 // pred_check
          %p146 = pneg %p81
        $region18: #{tpu_custom_call.1} parent=11 // pred_check_branch
          %148 = sbr.rel (%p146) target = $region20
        $region19: #{tpu_custom_call.1} parent=11 // pred_region
          _
        $region20: #{tpu_custom_call.1} parent=11 // pred_fallthru
          _
        // Predicated region
        $region21: #{tpu_custom_call.1} parent=11 // pred_check
          %p149 = pneg %p102
        $region22: #{tpu_custom_call.1} parent=11 // pred_check_branch
          %151 = sbr.rel (%p149) target = $region24
        $region23: #{tpu_custom_call.1} parent=11 // pred_region
          _
        $region24: #{tpu_custom_call.1} parent=11 // pred_fallthru
          _
      $region12: #{tpu_custom_call.1} parent=5 // pred_fallthru
        _
      %p152 = scmp.lt.s32.totalorder %s13, 2
      // Predicated region
      $region25: #{tpu_custom_call.1} parent=5 // pred_check
        %p153 = pneg %p152
      $region26: #{tpu_custom_call.1} parent=5 // pred_check_branch
        %155 = sbr.rel (%p153) target = $region28
      $region27: #{tpu_custom_call.1} parent=5 // pred_region
        // Predicated region
        $region29: #{tpu_custom_call.1} parent=27 // pred_check
          %p156 = pneg %p33
        $region30: #{tpu_custom_call.1} parent=27 // pred_check_branch
          %158 = sbr.rel (%p156) target = $region32
        $region31: #{tpu_custom_call.1} parent=27 // pred_region
          %p159 = scmp.lt.s32.totalorder %s13, 1
          %s160 = scalar_select %p159, %s13, 1
          %s161 = smul.addr %s160, 6
          %s162 = smul.addr %s161, 4
          %s163 = scalar_lea.vmem %s0, %s162
        $region32: #{tpu_custom_call.1} parent=27 // pred_fallthru
          _
      $region28: #{tpu_custom_call.1} parent=5 // pred_fallthru
        _
      %p164 = scmp.le.s32.totalorder 1, %s13
      %p165 = scmp.lt.s32.totalorder %s13, 3
      %p166 = pnand %p164, %p165
      %p167 = pneg %p166
      // Predicated region
      $region33: #{tpu_custom_call.1} parent=5 // pred_check
        _
      $region34: #{tpu_custom_call.1} parent=5 // pred_check_branch
        %169 = sbr.rel (%p166) target = $region36
      $region35: #{tpu_custom_call.1} parent=5 // pred_region
        %s170 = ssub.s32 %s13, 1
        %p171 = scmp.lt.s32.totalorder %s18, 1
        %s172 = scalar_select %p171, %s18, 1
        %s173 = smul.addr %s172, 6
        %s174 = smul.addr %s173, 4
        %s175 = scalar_lea.vmem %s0, %s174
        %p176 = pneg %p39
        %p177 = pneg %p36
        %p178 = pneg %p60
        %p179 = pneg %p57
        %p180 = pneg %p81
        %p181 = pneg %p78
        %p182 = pneg %p102
        %p183 = pneg %p99
        %p184 = pneg %p128
        %p185 = pneg %p125
        %s186 = sand.u32 %s115, 1
        %s187 = scalar_lea.sflag [#allocation3], %s186
        %s188 = sand.u32 %s115, 1
        %s189 = smul.addr %s188, 8
        %s190 = scalar_lea.vmem [#allocation2], %s189
        %p191 = scmp.lt.s32.totalorder %s18, 1
        %s192 = scalar_select %p191, %s18, 1
        %s193 = smul.addr %s192, 6
        %s194 = smul.addr %s193, 4
        %s195 = scalar_lea.vmem %s0, %s194
        %v197 = vld [vmem:[%s195] sm:$0xff]
        %v198 = vld [vmem:[%s195 + $0x8] sm:$0xff]
        %v199 = vld [vmem:[%s195 + $0x10] sm:$0xff]
        %v200 = vld [vmem:[%s1] sm:$0xf]
        %v201 = vld [vmem:[%s1 + $0x4] sm:$0xf]
        %v202 = vld [vmem:[%s1 + $0x8] sm:$0xf]
        %v203 = vld [vmem:[%s1 + $0xc] sm:$0xf]
        %v204 = vld [vmem:[%s1 + $0x10] sm:$0xf]
        %v205 = vld [vmem:[%s1 + $0x14] sm:$0xf]
        %v206 = vld [vmem:[%s1 + $0x18] sm:$0xf]
        %v207 = vld [vmem:[%s1 + $0x1c] sm:$0xf]
        %v208 = vld [vmem:[%s1 + $0x20] sm:$0xf]
        %v209 = vld [vmem:[%s1 + $0x24] sm:$0xf]
        %v210 = vld [vmem:[%s1 + $0x28] sm:$0xf]
        %v211 = vld [vmem:[%s1 + $0x2c] sm:$0xf]
        %v212 = vld [vmem:[%s1 + $0x30] sm:$0xf]
        %v213 = vld [vmem:[%s1 + $0x34] sm:$0xf]
        %v214 = vld [vmem:[%s1 + $0x38] sm:$0xf]
        %v215 = vld [vmem:[%s1 + $0x3c] sm:$0xf]
        %v216 = vld [vmem:[%s1 + $0x40] sm:$0xf]
        %v217 = vld [vmem:[%s1 + $0x44] sm:$0xf]
        %v218 = vld [vmem:[%s1 + $0x48] sm:$0xf]
        %v219 = vld [vmem:[%s1 + $0x4c] sm:$0xf]
        %v220 = vld [vmem:[%s1 + $0x50] sm:$0xf]
        %v221 = vld [vmem:[%s1 + $0x54] sm:$0xf]
        %v222 = vld [vmem:[%s1 + $0x58] sm:$0xf]
        %v223 = vld [vmem:[%s1 + $0x5c] sm:$0xf]
        %v224 = vld [vmem:[%s1 + $0x60] sm:$0xf]
        %v225 = vld [vmem:[%s1 + $0x64] sm:$0xf]
        %v226 = vld [vmem:[%s1 + $0x68] sm:$0xf]
        %v227 = vld [vmem:[%s1 + $0x6c] sm:$0xf]
        %v228 = vld [vmem:[%s1 + $0x70] sm:$0xf]
        %v229 = vld [vmem:[%s1 + $0x74] sm:$0xf]
        %v230 = vld [vmem:[%s1 + $0x78] sm:$0xf]
        %v231 = vld [vmem:[%s1 + $0x7c] sm:$0xf]
        %v232 = vld [vmem:[%s1 + $0x80] sm:$0xf]
        %v233 = vld [vmem:[%s1 + $0x84] sm:$0xf]
        %v234 = vld [vmem:[%s1 + $0x88] sm:$0xf]
        %v235 = vld [vmem:[%s1 + $0x8c] sm:$0xf]
        %v236 = vld [vmem:[%s1 + $0x90] sm:$0xf]
        %v237 = vld [vmem:[%s1 + $0x94] sm:$0xf]
        %v238 = vld [vmem:[%s1 + $0x98] sm:$0xf]
        %v239 = vld [vmem:[%s1 + $0x9c] sm:$0xf]
        %v240 = vld [vmem:[%s1 + $0xa0] sm:$0xf]
        %v241 = vld [vmem:[%s1 + $0xa4] sm:$0xf]
        %v242 = vld [vmem:[%s1 + $0xa8] sm:$0xf]
        %v243 = vld [vmem:[%s1 + $0xac] sm:$0xf]
        %v244 = vld [vmem:[%s1 + $0xb0] sm:$0xf]
        %v245 = vld [vmem:[%s1 + $0xb4] sm:$0xf]
        %v246 = vld [vmem:[%s1 + $0xb8] sm:$0xf]
        %v247 = vld [vmem:[%s1 + $0xbc] sm:$0xf]
        %v248 = vld [vmem:[%s1 + $0xc0] sm:$0xf]
        %v249 = vld [vmem:[%s1 + $0xc4] sm:$0xf]
        %v250 = vld [vmem:[%s1 + $0xc8] sm:$0xf]
        %v251 = vld [vmem:[%s1 + $0xcc] sm:$0xf]
        %v252 = vld [vmem:[%s1 + $0xd0] sm:$0xf]
        %v253 = vld [vmem:[%s1 + $0xd4] sm:$0xf]
        %v254 = vld [vmem:[%s1 + $0xd8] sm:$0xf]
        %v255 = vld [vmem:[%s1 + $0xdc] sm:$0xf]
        %v256 = vld [vmem:[%s1 + $0xe0] sm:$0xf]
        %v257 = vld [vmem:[%s1 + $0xe4] sm:$0xf]
        %v258 = vld [vmem:[%s1 + $0xe8] sm:$0xf]
        %v259 = vld [vmem:[%s1 + $0xec] sm:$0xf]
        %v260 = vld [vmem:[%s1 + $0xf0] sm:$0xf]
        %v261 = vld [vmem:[%s1 + $0xf4] sm:$0xf]
        %v262 = vld [vmem:[%s1 + $0xf8] sm:$0xf]
        %v263 = vld [vmem:[%s1 + $0xfc] sm:$0xf]
        %v264 = vld [vmem:[%s1 + $0x100] sm:$0xf]
        %v265 = vld [vmem:[%s1 + $0x104] sm:$0xf]
        %v266 = vld [vmem:[%s1 + $0x108] sm:$0xf]
        %v267 = vld [vmem:[%s1 + $0x10c] sm:$0xf]
        %v268 = vld [vmem:[%s1 + $0x110] sm:$0xf]
        %v269 = vld [vmem:[%s1 + $0x114] sm:$0xf]
        %v270 = vld [vmem:[%s1 + $0x118] sm:$0xf]
        %v271 = vld [vmem:[%s1 + $0x11c] sm:$0xf]
        %v272 = vld [vmem:[%s1 + $0x120] sm:$0xf]
        %v273 = vld [vmem:[%s1 + $0x124] sm:$0xf]
        %v274 = vld [vmem:[%s1 + $0x128] sm:$0xf]
        %v275 = vld [vmem:[%s1 + $0x12c] sm:$0xf]
        %v276 = vld [vmem:[%s1 + $0x130] sm:$0xf]
        %v277 = vld [vmem:[%s1 + $0x134] sm:$0xf]
        %v278 = vld [vmem:[%s1 + $0x138] sm:$0xf]
        %v279 = vld [vmem:[%s1 + $0x13c] sm:$0xf]
        %v280 = vld [vmem:[%s1 + $0x140] sm:$0xf]
        %v281 = vld [vmem:[%s1 + $0x144] sm:$0xf]
        %v282 = vld [vmem:[%s1 + $0x148] sm:$0xf]
        %v283 = vld [vmem:[%s1 + $0x14c] sm:$0xf]
        %v284 = vld [vmem:[%s1 + $0x150] sm:$0xf]
        %v285 = vld [vmem:[%s1 + $0x154] sm:$0xf]
        %v286 = vld [vmem:[%s1 + $0x158] sm:$0xf]
        %v287 = vld [vmem:[%s1 + $0x15c] sm:$0xf]
        %v288 = vld [vmem:[%s1 + $0x160] sm:$0xf]
        %v289 = vld [vmem:[%s1 + $0x164] sm:$0xf]
        %v290 = vld [vmem:[%s1 + $0x168] sm:$0xf]
        %v291 = vld [vmem:[%s1 + $0x16c] sm:$0xf]
        %v292 = vld [vmem:[%s1 + $0x170] sm:$0xf]
        %v293 = vld [vmem:[%s1 + $0x174] sm:$0xf]
        %v294 = vld [vmem:[%s1 + $0x178] sm:$0xf]
        %v295 = vld [vmem:[%s1 + $0x17c] sm:$0xf]
        %v299 = vunpack.c.l.b16 %v197
        %v300 = vunpack.c.h.b16 %v197
        %v301 = vunpack.c.l.b16 %v198
        %v302 = vunpack.c.h.b16 %v198
        %v303 = vunpack.c.l.b16 %v199
        %v304 = vunpack.c.h.b16 %v199
        %v305 = vpack.c.b16 %v299, %v299
        %v306 = vpack.c.b16 %v300, %v300
        %v307 = vpack.c.b16 %v301, %v301
        %v308 = vpack.c.b16 %v302, %v302
        %v309 = vpack.c.b16 %v303, %v303
        %v310 = vpack.c.b16 %v304, %v304
        %v413 = vunpack.c.l.b16 %v200
        %v414 = vunpack.c.l.b16 %v201
        %v415 = vunpack.c.l.b16 %v202
        %v416 = vunpack.c.l.b16 %v203
        %v417 = vunpack.c.l.b16 %v204
        %v418 = vunpack.c.l.b16 %v205
        %v419 = vunpack.c.l.b16 %v206
        %v420 = vunpack.c.l.b16 %v207
        %v421 = vunpack.c.l.b16 %v208
        %v422 = vunpack.c.l.b16 %v209
        %v423 = vunpack.c.l.b16 %v210
        %v424 = vunpack.c.l.b16 %v211
        %v425 = vunpack.c.l.b16 %v212
        %v426 = vunpack.c.l.b16 %v213
        %v427 = vunpack.c.l.b16 %v214
        %v428 = vunpack.c.l.b16 %v215
        %v429 = vunpack.c.l.b16 %v216
        %v430 = vunpack.c.l.b16 %v217
        %v431 = vunpack.c.l.b16 %v218
        %v432 = vunpack.c.l.b16 %v219
        %v433 = vunpack.c.l.b16 %v220
        %v434 = vunpack.c.l.b16 %v221
        %v435 = vunpack.c.l.b16 %v222
        %v436 = vunpack.c.l.b16 %v223
        %v437 = vunpack.c.l.b16 %v224
        %v438 = vunpack.c.l.b16 %v225
        %v439 = vunpack.c.l.b16 %v226
        %v440 = vunpack.c.l.b16 %v227
        %v441 = vunpack.c.l.b16 %v228
        %v442 = vunpack.c.l.b16 %v229
        %v443 = vunpack.c.l.b16 %v230
        %v444 = vunpack.c.l.b16 %v231
        %v445 = vunpack.c.l.b16 %v232
        %v446 = vunpack.c.l.b16 %v233
        %v447 = vunpack.c.l.b16 %v234
        %v448 = vunpack.c.l.b16 %v235
        %v449 = vunpack.c.l.b16 %v236
        %v450 = vunpack.c.l.b16 %v237
        %v451 = vunpack.c.l.b16 %v238
        %v452 = vunpack.c.l.b16 %v239
        %v453 = vunpack.c.l.b16 %v240
        %v454 = vunpack.c.l.b16 %v241
        %v455 = vunpack.c.l.b16 %v242
        %v456 = vunpack.c.l.b16 %v243
        %v457 = vunpack.c.l.b16 %v244
        %v458 = vunpack.c.l.b16 %v245
        %v459 = vunpack.c.l.b16 %v246
        %v460 = vunpack.c.l.b16 %v247
        %v461 = vunpack.c.l.b16 %v248
        %v462 = vunpack.c.l.b16 %v249
        %v463 = vunpack.c.l.b16 %v250
        %v464 = vunpack.c.l.b16 %v251
        %v465 = vunpack.c.l.b16 %v252
        %v466 = vunpack.c.l.b16 %v253
        %v467 = vunpack.c.l.b16 %v254
        %v468 = vunpack.c.l.b16 %v255
        %v469 = vunpack.c.l.b16 %v256
        %v470 = vunpack.c.l.b16 %v257
        %v471 = vunpack.c.l.b16 %v258
        %v472 = vunpack.c.l.b16 %v259
        %v473 = vunpack.c.l.b16 %v260
        %v474 = vunpack.c.l.b16 %v261
        %v475 = vunpack.c.l.b16 %v262
        %v476 = vunpack.c.l.b16 %v263
        %v477 = vunpack.c.l.b16 %v264
        %v478 = vunpack.c.l.b16 %v265
        %v479 = vunpack.c.l.b16 %v266
        %v480 = vunpack.c.l.b16 %v267
        %v481 = vunpack.c.l.b16 %v268
        %v482 = vunpack.c.l.b16 %v269
        %v483 = vunpack.c.l.b16 %v270
        %v484 = vunpack.c.l.b16 %v271
        %v485 = vunpack.c.l.b16 %v272
        %v486 = vunpack.c.l.b16 %v273
        %v487 = vunpack.c.l.b16 %v274
        %v488 = vunpack.c.l.b16 %v275
        %v489 = vunpack.c.l.b16 %v276
        %v490 = vunpack.c.l.b16 %v277
        %v491 = vunpack.c.l.b16 %v278
        %v492 = vunpack.c.l.b16 %v279
        %v493 = vunpack.c.l.b16 %v280
        %v494 = vunpack.c.l.b16 %v281
        %v495 = vunpack.c.l.b16 %v282
        %v496 = vunpack.c.l.b16 %v283
        %v497 = vunpack.c.l.b16 %v284
        %v498 = vunpack.c.l.b16 %v285
        %v499 = vunpack.c.l.b16 %v286
        %v500 = vunpack.c.l.b16 %v287
        %v501 = vunpack.c.l.b16 %v288
        %v502 = vunpack.c.l.b16 %v289
        %v503 = vunpack.c.l.b16 %v290
        %v504 = vunpack.c.l.b16 %v291
        %v505 = vunpack.c.l.b16 %v292
        %v506 = vunpack.c.l.b16 %v293
        %v507 = vunpack.c.l.b16 %v294
        %v508 = vunpack.c.l.b16 %v295
        %v509 = vpack.c.b16 %v414, %v413
        %v510 = vpack.c.b16 %v416, %v415
        %v511 = vpack.c.b16 %v418, %v417
        %v512 = vpack.c.b16 %v420, %v419
        %v513 = vpack.c.b16 %v422, %v421
        %v514 = vpack.c.b16 %v424, %v423
        %v515 = vpack.c.b16 %v426, %v425
        %v516 = vpack.c.b16 %v428, %v427
        %v517 = vpack.c.b16 %v430, %v429
        %v518 = vpack.c.b16 %v432, %v431
        %v519 = vpack.c.b16 %v434, %v433
        %v520 = vpack.c.b16 %v436, %v435
        %v521 = vpack.c.b16 %v438, %v437
        %v522 = vpack.c.b16 %v440, %v439
        %v523 = vpack.c.b16 %v442, %v441
        %v524 = vpack.c.b16 %v444, %v443
        %v525 = vpack.c.b16 %v446, %v445
        %v526 = vpack.c.b16 %v448, %v447
        %v527 = vpack.c.b16 %v450, %v449
        %v528 = vpack.c.b16 %v452, %v451
        %v529 = vpack.c.b16 %v454, %v453
        %v530 = vpack.c.b16 %v456, %v455
        %v531 = vpack.c.b16 %v458, %v457
        %v532 = vpack.c.b16 %v460, %v459
        %v533 = vpack.c.b16 %v462, %v461
        %v534 = vpack.c.b16 %v464, %v463
        %v535 = vpack.c.b16 %v466, %v465
        %v536 = vpack.c.b16 %v468, %v467
        %v537 = vpack.c.b16 %v470, %v469
        %v538 = vpack.c.b16 %v472, %v471
        %v539 = vpack.c.b16 %v474, %v473
        %v540 = vpack.c.b16 %v476, %v475
        %v541 = vpack.c.b16 %v478, %v477
        %v542 = vpack.c.b16 %v480, %v479
        %v543 = vpack.c.b16 %v482, %v481
        %v544 = vpack.c.b16 %v484, %v483
        %v545 = vpack.c.b16 %v486, %v485
        %v546 = vpack.c.b16 %v488, %v487
        %v547 = vpack.c.b16 %v490, %v489
        %v548 = vpack.c.b16 %v492, %v491
        %v549 = vpack.c.b16 %v494, %v493
        %v550 = vpack.c.b16 %v496, %v495
        %v551 = vpack.c.b16 %v498, %v497
        %v552 = vpack.c.b16 %v500, %v499
        %v553 = vpack.c.b16 %v502, %v501
        %v554 = vpack.c.b16 %v504, %v503
        %v555 = vpack.c.b16 %v506, %v505
        %v556 = vpack.c.b16 %v508, %v507
        %605 = vmatprep.subr.bf16.mxu0 0
        %606 = vmatpush1.bf16.msra.mxu0 %v509
        %607 = vmatprep.subr.bf16.mxu0 0
        %608 = vmatpush1.bf16.msra.mxu0 %v510
        %609 = vmatprep.subr.bf16.mxu0 0
        %610 = vmatpush1.bf16.msra.mxu0 %v511
        %611 = vmatprep.subr.bf16.mxu0 0
        %612 = vmatpush1.bf16.msra.mxu0 %v512
        %613 = vmatprep.subr.bf16.mxu0 0
        %614 = vmatpush1.bf16.msra.mxu0 %v513
        %615 = vmatprep.subr.bf16.mxu0 0
        %616 = vmatpush1.bf16.msra.mxu0 %v514
        %617 = vmatprep.subr.bf16.mxu0 0
        %618 = vmatpush1.bf16.msra.mxu0 %v515
        %619 = vmatprep.subr.bf16.mxu0 0
        %620 = vmatpush1.bf16.msra.mxu0 %v516
        %621 = vmatprep.subr.bf16.mxu0 0
        %622 = vmatpush1.bf16.msra.mxu0 %v517
        %623 = vmatprep.subr.bf16.mxu0 0
        %624 = vmatpush1.bf16.msra.mxu0 %v518
        %625 = vmatprep.subr.bf16.mxu0 0
        %626 = vmatpush1.bf16.msra.mxu0 %v519
        %627 = vmatprep.subr.bf16.mxu0 0
        %628 = vmatpush1.bf16.msra.mxu0 %v520
        %629 = vmatprep.subr.bf16.mxu0 0
        %630 = vmatpush1.bf16.msra.mxu0 %v521
        %631 = vmatprep.subr.bf16.mxu0 0
        %632 = vmatpush1.bf16.msra.mxu0 %v522
        %633 = vmatprep.subr.bf16.mxu0 0
        %634 = vmatpush1.bf16.msra.mxu0 %v523
        %635 = vmatprep.subr.bf16.mxu0 0
        %636 = vmatpush1.bf16.msra.mxu0 %v524
        %637 = vmatprep.mubr.bf16.mxu0 %v306
        %638 = vmatmul.mubr.bf16.gmra.mrb[0].mxu0 %v305
        %v639 = vpop.f32.mrb[0].mxu0
        %v640 = vadd.f32 0.0, %v639
        %v641 = vpop.f32.mrb[0].mxu0
        %v642 = vpop.f32.mrb[0].mxu0
        %v643 = vpop.f32.mrb[0].mxu0
        %644 = vdwg.mxu0
        %645 = vmatprep.subr.bf16.mxu0 0
        %646 = vmatpush1.bf16.msra.mxu0 %v525
        %647 = vmatprep.subr.bf16.mxu0 0
        %648 = vmatpush1.bf16.msra.mxu0 %v526
        %649 = vmatprep.subr.bf16.mxu0 0
        %650 = vmatpush1.bf16.msra.mxu0 %v527
        %651 = vmatprep.subr.bf16.mxu0 0
        %652 = vmatpush1.bf16.msra.mxu0 %v528
        %653 = vmatprep.subr.bf16.mxu0 0
        %654 = vmatpush1.bf16.msra.mxu0 %v529
        %655 = vmatprep.subr.bf16.mxu0 0
        %656 = vmatpush1.bf16.msra.mxu0 %v530
        %657 = vmatprep.subr.bf16.mxu0 0
        %658 = vmatpush1.bf16.msra.mxu0 %v531
        %659 = vmatprep.subr.bf16.mxu0 0
        %660 = vmatpush1.bf16.msra.mxu0 %v532
        %661 = vmatprep.subr.bf16.mxu0 0
        %662 = vmatpush1.bf16.msra.mxu0 %v533
        %663 = vmatprep.subr.bf16.mxu0 0
        %664 = vmatpush1.bf16.msra.mxu0 %v534
        %665 = vmatprep.subr.bf16.mxu0 0
        %666 = vmatpush1.bf16.msra.mxu0 %v535
        %667 = vmatprep.subr.bf16.mxu0 0
        %668 = vmatpush1.bf16.msra.mxu0 %v536
        %669 = vmatprep.subr.bf16.mxu0 0
        %670 = vmatpush1.bf16.msra.mxu0 %v537
        %671 = vmatprep.subr.bf16.mxu0 0
        %672 = vmatpush1.bf16.msra.mxu0 %v538
        %673 = vmatprep.subr.bf16.mxu0 0
        %674 = vmatpush1.bf16.msra.mxu0 %v539
        %675 = vmatprep.subr.bf16.mxu0 0
        %676 = vmatpush1.bf16.msra.mxu0 %v540
        %677 = vmatprep.mubr.bf16.mxu0 %v308
        %678 = vmatmul.mubr.bf16.gmra.mrb[0].mxu0 %v307
        %v679 = vpop.f32.mrb[0].mxu0
        %v680 = vadd.f32 %v640, %v679
        %v681 = vpop.f32.mrb[0].mxu0
        %v682 = vpop.f32.mrb[0].mxu0
        %v683 = vpop.f32.mrb[0].mxu0
        %684 = vdwg.mxu0
        %685 = vmatprep.subr.bf16.mxu0 0
        %686 = vmatpush1.bf16.msra.mxu0 %v541
        %687 = vmatprep.subr.bf16.mxu0 0
        %688 = vmatpush1.bf16.msra.mxu0 %v542
        %689 = vmatprep.subr.bf16.mxu0 0
        %690 = vmatpush1.bf16.msra.mxu0 %v543
        %691 = vmatprep.subr.bf16.mxu0 0
        %692 = vmatpush1.bf16.msra.mxu0 %v544
        %693 = vmatprep.subr.bf16.mxu0 0
        %694 = vmatpush1.bf16.msra.mxu0 %v545
        %695 = vmatprep.subr.bf16.mxu0 0
        %696 = vmatpush1.bf16.msra.mxu0 %v546
        %697 = vmatprep.subr.bf16.mxu0 0
        %698 = vmatpush1.bf16.msra.mxu0 %v547
        %699 = vmatprep.subr.bf16.mxu0 0
        %700 = vmatpush1.bf16.msra.mxu0 %v548
        %701 = vmatprep.subr.bf16.mxu0 0
        %702 = vmatpush1.bf16.msra.mxu0 %v549
        %703 = vmatprep.subr.bf16.mxu0 0
        %704 = vmatpush1.bf16.msra.mxu0 %v550
        %705 = vmatprep.subr.bf16.mxu0 0
        %706 = vmatpush1.bf16.msra.mxu0 %v551
        %707 = vmatprep.subr.bf16.mxu0 0
        %708 = vmatpush1.bf16.msra.mxu0 %v552
        %709 = vmatprep.subr.bf16.mxu0 0
        %710 = vmatpush1.bf16.msra.mxu0 %v553
        %711 = vmatprep.subr.bf16.mxu0 0
        %712 = vmatpush1.bf16.msra.mxu0 %v554
        %713 = vmatprep.subr.bf16.mxu0 0
        %714 = vmatpush1.bf16.msra.mxu0 %v555
        %715 = vmatprep.subr.bf16.mxu0 0
        %716 = vmatpush1.bf16.msra.mxu0 %v556
        %717 = vmatprep.mubr.bf16.mxu0 %v310
        %718 = vmatmul.mubr.bf16.gmra.mrb[0].mxu0 %v309
        %v719 = vpop.f32.mrb[0].mxu0
        %v720 = vadd.f32 %v680, %v719
        %v721 = vpop.f32.mrb[0].mxu0
        %v722 = vpop.f32.mrb[0].mxu0
        %v723 = vpop.f32.mrb[0].mxu0
        %724 = vdwg.mxu0
        %vm725 = vcmask 261120
        %v726 = vsel %vm725, %v720, 0.0
        %727 = vadd.xlane.f32.xlu0 %v726
        %v728 = vpop.xlane.xlu0 %727
        %v729 = vrcp.pop 32.0
        %v730 = vmul.f32 %v728, %v729
        %v731 = vmul.f32 %v720, %v720
        %v732 = vsel %vm725, %v731, 0.0
        %733 = vadd.xlane.f32.xlu0 %v732
        %v734 = vpop.xlane.xlu0 %733
        %v735 = vmul.f32 %v734, %v729
        %v736 = vmul.f32 %v730, %v730
        %v737 = vsub.f32 %v735, %v736
        %v738 = vmax.f32 %v737, 0.0
        %v739 = vsub.f32 %v720, %v730
        %v740 = vadd.f32 %v738, 1e-05
        %v741 = vrsqrt.pop %v740
        %v742 = vmul.f32 %v739, %v741
        %v743 = vpack.c.bf16 %v742, %v742
        %v744 = vld [vmem:[%s2] sm:$0xf]
        %v745 = vld [vmem:[%s2 + $0x4] sm:$0xf]
        %v746 = vld [vmem:[%s2 + $0x8] sm:$0xf]
        %v747 = vld [vmem:[%s2 + $0xc] sm:$0xf]
        %v748 = vld [vmem:[%s3] sm:$0x1]
        %v750 = vlaneseq
        %v751 = vshrl.u32 %v750, 7
        %v752 = vsub.s32 0, %v751
        %v753 = vrot.slane %v748, %v752
        %v759 = vunpack.c.l.b16 %v744
        %v760 = vunpack.c.l.b16 %v745
        %v761 = vunpack.c.l.b16 %v746
        %v762 = vunpack.c.l.b16 %v747
        %v763 = vpack.c.b16 %v760, %v759
        %v764 = vpack.c.b16 %v762, %v761
        %v768 = vsel %vm725, %v743, 0
        %770 = vmatprep.subr.bf16.mxu0 0
        %771 = vmatpush1.bf16.msra.mxu0 %v763
        %772 = vmatprep.subr.bf16.mxu0 0
        %773 = vmatpush1.bf16.msra.mxu0 %v764
        %774 = vmatprep.subr.bf16.mxu0 0
        %775 = vmatpush1.bf16.msra.mxu0 0
        %776 = vmatprep.subr.bf16.mxu0 0
        %777 = vmatpush1.bf16.msra.mxu0 0
        %778 = vmatprep.subr.bf16.mxu0 0
        %779 = vmatpush1.bf16.msra.mxu0 0
        %780 = vmatprep.subr.bf16.mxu0 0
        %781 = vmatpush1.bf16.msra.mxu0 0
        %782 = vmatprep.subr.bf16.mxu0 0
        %783 = vmatpush1.bf16.msra.mxu0 0
        %784 = vmatprep.subr.bf16.mxu0 0
        %785 = vmatpush1.bf16.msra.mxu0 0
        %786 = vmatprep.subr.bf16.mxu0 0
        %787 = vmatpush1.bf16.msra.mxu0 0
        %788 = vmatprep.subr.bf16.mxu0 0
        %789 = vmatpush1.bf16.msra.mxu0 0
        %790 = vmatprep.subr.bf16.mxu0 0
        %791 = vmatpush1.bf16.msra.mxu0 0
        %792 = vmatprep.subr.bf16.mxu0 0
        %793 = vmatpush1.bf16.msra.mxu0 0
        %794 = vmatprep.subr.bf16.mxu0 0
        %795 = vmatpush1.bf16.msra.mxu0 0
        %796 = vmatprep.subr.bf16.mxu0 0
        %797 = vmatpush1.bf16.msra.mxu0 0
        %798 = vmatprep.subr.bf16.mxu0 0
        %799 = vmatpush1.bf16.msra.mxu0 0
        %800 = vmatprep.subr.bf16.mxu0 0
        %801 = vmatpush1.bf16.msra.mxu0 0
        %802 = vmatprep.mubr.bf16.mxu0 0
        %803 = vmatmul.mubr.bf16.gmra.mrb[0].mxu0 %v768
        %v804 = vpop.f32.mrb[0].mxu0
        %v805 = vadd.f32 %v753, %v804
        %v806 = vpop.f32.mrb[0].mxu0
        %v807 = vpop.f32.mrb[0].mxu0
        %v808 = vpop.f32.mrb[0].mxu0
        %809 = vdwg.mxu0
        %810 = vst [vmem:[%s190] sm:$0xff] %v805
        %s811 = sand.u32 %s115, 1
        %s812 = scalar_lea.sflag [#allocation3], %s811
        %s813 = sand.u32 %s115, 1
        %s814 = smul.addr %s813, 8
        %s815 = scalar_lea.vmem [#allocation2], %s814
        // Predicated region
        $region37: #{tpu_custom_call.1} parent=35 // pred_check
          %p816 = pneg %p125
        $region38: #{tpu_custom_call.1} parent=35 // pred_check_branch
          %818 = sbr.rel (%p816) target = $region40
        $region39: #{tpu_custom_call.1} parent=35 // pred_region
          %s820 = ssub.s32 128, 128
          %821 = vsyncadd %s812, %s820
          %s822 = smul.addr %s18, 128
          %s823 = scalar_lea.hbm %s4, %s822
          %s825 = sshll.u32 %s815, 4
          %s826 = int_to_ptr.vmem [resolvable:$true] %s825
          %828 = dma.vmem_to_hbm [thread:$0]  %s826, 128, %s823, %s812
        $region40: #{tpu_custom_call.1} parent=35 // pred_fallthru
          _
      $region36: #{tpu_custom_call.1} parent=5 // pred_fallthru
        _
      %p829 = scmp.le.s32.totalorder 2, %s13
      // Predicated region
      $region41: #{tpu_custom_call.1} parent=5 // pred_check
        %p830 = pneg %p829
      $region42: #{tpu_custom_call.1} parent=5 // pred_check_branch
        %832 = sbr.rel (%p830) target = $region44
      $region43: #{tpu_custom_call.1} parent=5 // pred_region
        %s833 = ssub.s32 %s13, 2
        // Predicated region
        $region45: #{tpu_custom_call.1} parent=43 // pred_check
          %p834 = pneg %p131
        $region46: #{tpu_custom_call.1} parent=43 // pred_check_branch
          %836 = sbr.rel (%p834) target = $region48
        $region47: #{tpu_custom_call.1} parent=43 // pred_region
          %s837 = sand.u32 %s116, 1
          %s838 = scalar_lea.sflag [#allocation3], %s837
          %s839 = sand.u32 %s116, 1
          %s840 = smul.addr %s839, 8
          %s841 = scalar_lea.vmem [#allocation2], %s840
          %842 = dma.done %s838, 128
        $region48: #{tpu_custom_call.1} parent=43 // pred_fallthru
          _
      $region44: #{tpu_custom_call.1} parent=5 // pred_fallthru
        _
    $region6: #{tpu_custom_call.1} parent=1 // loop_footer
      %s17 = sadd.s32 1, %s13
    $region7: #{tpu_custom_call.1} parent=1 // loop_footer_branch
      %12 = sbr.rel target = $region3
    $region8: #{tpu_custom_call.1} parent=1 // loop_exit
      _
    %843 = vsyncpa [#allocation3], 1
    %s844 = scalar_lea.sflag [#allocation3], 1
    %845 = vsyncpa %s844, 1

</llo_original>
